<compile_context>
chip_gen: v7x
topology: tpu7x:2x2x1
jax: 0.10.0
libtpu: 0.0.40
codegen_flags: <defaults>
</compile_context>

<pallas_src>
import jax
import jax.numpy as jnp
from jax.experimental import pallas as pl
from jax.experimental.pallas import tpu as pltpu


def lstm_kernel(x_ref, w_ih_ref, w_hh_ref, b_ref, h0_ref, c0_ref,
                y_ref, hn_ref, cn_ref, gx_ref):
    """Whole LSTM sequence in one kernel invocation (time-major inside).

    x_ref:    (T, B, N)  time-major input
    w_ih_ref: (N, 4N)    W_ih^T, gate columns ordered [i, f, o, g]
    w_hh_ref: (N, 4N)    W_hh^T, gate columns ordered [i, f, o, g]
    b_ref:    (1, 4N)    b_ih + b_hh, same gate order
    h0_ref, c0_ref: (B, N)
    y_ref:    (T, B, N)  outputs (h_t for every t), time-major
    hn_ref, cn_ref: (B, N) final states
    gx_ref:   (T, B, 4N) VMEM scratch holding the hoisted input projection
    """
    T, B, N = x_ref.shape

    # ---- Hoisted input projection: one fat MXU matmul (M = T*B) + one bias
    # add, written once to VMEM scratch so it is NOT a live value in the loop.
    x2d = x_ref[...].reshape(T * B, N)                                 # (T*B, N)
    gx = jnp.dot(x2d, w_ih_ref[...],
                 preferred_element_type=jnp.float32) + b_ref[...]      # (T*B, 4N)
    gx_ref[...] = gx.reshape(T, B, 4 * N)

    h = h0_ref[...].astype(jnp.float32)                                # (B, N)
    c = c0_ref[...].astype(jnp.float32)                                # (B, N)

    # ---- Recurrence: only h @ W_hh^T per step; fully unrolled (T is static).
    # gx_ref[t] is a contiguous tile load; y_ref[t] = h is an unmasked store.
    for t in range(T):
        gates = gx_ref[t] + jnp.dot(h, w_hh_ref[...],
                                    preferred_element_type=jnp.float32)  # (B, 4N)
        # Gate column order [i, f, o, g]: one fused sigmoid + one tanh.
        sig = jax.nn.sigmoid(gates[:, :3 * N])
        g_g = jnp.tanh(gates[:, 3 * N:])
        i_g = sig[:, 0 * N:1 * N]
        f_g = sig[:, 1 * N:2 * N]
        o_g = sig[:, 2 * N:3 * N]

        c = f_g * c + i_g * g_g
        h = o_g * jnp.tanh(c)

        y_ref[t] = h.astype(y_ref.dtype)

    hn_ref[...] = h.astype(hn_ref.dtype)
    cn_ref[...] = c.astype(cn_ref.dtype)


@jax.jit
def lstm_bart_forward(features, h, c, w_ih, w_hh, b_ih, b_hh):
    """Equivalent of LSTMBart.forward(features, h, c).

    features: (B, T, N) float32 (batch_first)
    h, c:     (1, B, N) float32
    w_ih, w_hh: (4N, N) float32 (PyTorch weight_ih_l0 / weight_hh_l0, [i,f,g,o])
    b_ih, b_hh: (4N,)   float32
    Returns (lstm_features (B, T, N), (h_n (1, B, N), c_n (1, B, N)))
    """
    B, T, N = features.shape

    # One-time param prep: reorder gates [i,f,g,o] -> [i,f,o,g] and transpose.
    def reorder_gates(p):
        i_p, f_p, g_p, o_p = jnp.split(p, 4, axis=0)
        return jnp.concatenate([i_p, f_p, o_p, g_p], axis=0)

    w_ih_t = jnp.transpose(reorder_gates(w_ih))            # (N, 4N)
    w_hh_t = jnp.transpose(reorder_gates(w_hh))            # (N, 4N)
    b = reorder_gates(b_ih + b_hh).reshape(1, 4 * N)       # (1, 4N)

    # Time-major activations for contiguous per-step tile access in the kernel.
    x_tm = jnp.transpose(features, (1, 0, 2))              # (T, B, N)

    out_shapes = (
        jax.ShapeDtypeStruct((T, B, N), features.dtype),   # y (time-major)
        jax.ShapeDtypeStruct((B, N), features.dtype),      # h_n
        jax.ShapeDtypeStruct((B, N), features.dtype),      # c_n
    )

    def vmem_spec():
        return pl.BlockSpec(memory_space=pltpu.MemorySpace.VMEM)

    y_tm, hn, cn = pl.pallas_call(
        lstm_kernel,
        out_shape=out_shapes,
        in_specs=[vmem_spec() for _ in range(6)],
        out_specs=tuple(vmem_spec() for _ in range(3)),
        scratch_shapes=[pltpu.VMEM((T, B, 4 * N), jnp.float32)],
    )(x_tm, w_ih_t, w_hh_t, b, h[0], c[0])

    y = jnp.transpose(y_tm, (1, 0, 2))                     # back to batch-first
    return y, (hn[None, ...], cn[None, ...])


def _reference_lstm(features, h, c, w_ih, w_hh, b_ih, b_hh):
    """Pure-JAX reference (lax.scan) mirroring PyTorch nn.LSTM semantics."""
    B, T, N = features.shape
    x_tm = jnp.transpose(features, (1, 0, 2))

    def step(carry, x_t):
        h_t, c_t = carry
        gates = x_t @ w_ih.T + b_ih + h_t @ w_hh.T + b_hh
        i_g = jax.nn.sigmoid(gates[:, 0 * N:1 * N])
        f_g = jax.nn.sigmoid(gates[:, 1 * N:2 * N])
        g_g = jnp.tanh(gates[:, 2 * N:3 * N])
        o_g = jax.nn.sigmoid(gates[:, 3 * N:4 * N])
        c_new = f_g * c_t + i_g * g_g
        h_new = o_g * jnp.tanh(c_new)
        return (h_new, c_new), h_new

    (h_n, c_n), ys = jax.lax.scan(step, (h[0], c[0]), x_tm)
    return jnp.transpose(ys, (1, 0, 2)), (h_n[None], c_n[None])


if __name__ == "__main__":
    # Small shapes consistent with the module: batch=8, seq=8, hidden=n=128
    B, T, N = 8, 8, 128
    key = jax.random.PRNGKey(0)
    ks = jax.random.split(key, 7)
    bound = 1.0 / jnp.sqrt(jnp.float32(N))

    features = jax.random.normal(ks[0], (B, T, N), jnp.float32)
    h0 = jax.random.normal(ks[1], (1, B, N), jnp.float32)
    c0 = jax.random.normal(ks[2], (1, B, N), jnp.float32)

    # PyTorch parameter shapes: weight_* (4N, N), bias_* (4N,)
    w_ih = jax.random.uniform(ks[3], (4 * N, N), jnp.float32, -bound, bound)
    w_hh = jax.random.uniform(ks[4], (4 * N, N), jnp.float32, -bound, bound)
    b_ih = jax.random.uniform(ks[5], (4 * N,), jnp.float32, -bound, bound)
    b_hh = jax.random.uniform(ks[6], (4 * N,), jnp.float32, -bound, bound)

    out, (h_n, c_n) = lstm_bart_forward(features, h0, c0, w_ih, w_hh, b_ih, b_hh)
    jax.block_until_ready((out, h_n, c_n))

    # Correctness check vs pure-JAX reference
    out_ref, (h_ref, c_ref) = _reference_lstm(features, h0, c0, w_ih, w_hh, b_ih, b_hh)
    assert out.shape == (B, T, N) and h_n.shape == (1, B, N) and c_n.shape == (1, B, N)
    assert jnp.max(jnp.abs(out - out_ref)) < 1e-5
    assert jnp.max(jnp.abs(h_n - h_ref)) < 1e-5
    assert jnp.max(jnp.abs(c_n - c_ref)) < 1e-5

    print("KERNEL_OK")
</pallas_src>

<mosaic_0001>
module attributes {stable_mosaic.version = 11 : i64} {
  func.func @lstm_kernel(%arg0: memref<8x8x128xf32, #tpu.memory_space<vmem>>, %arg1: memref<128x512xf32, #tpu.memory_space<vmem>>, %arg2: memref<128x512xf32, #tpu.memory_space<vmem>>, %arg3: memref<1x512xf32, #tpu.memory_space<vmem>>, %arg4: memref<8x128xf32, #tpu.memory_space<vmem>>, %arg5: memref<8x128xf32, #tpu.memory_space<vmem>>, %arg6: memref<8x8x128xf32, #tpu.memory_space<vmem>>, %arg7: memref<8x128xf32, #tpu.memory_space<vmem>>, %arg8: memref<8x128xf32, #tpu.memory_space<vmem>>, %arg9: memref<8x8x512xf32, #tpu.memory_space<vmem>>) attributes {dimension_semantics = [], scalar_prefetch = 0 : i64, scratch_operands = 1 : i64, tpu.core_type = #tpu.core_type<tc>} {
    %c0 = arith.constant 0 : index
    %c0_0 = arith.constant 0 : index
    %c0_1 = arith.constant 0 : index
    %0 = vector.load %arg0[%c0, %c0_0, %c0_1] : memref<8x8x128xf32, #tpu.memory_space<vmem>>, vector<8x8x128xf32>
    %1 = vector.shape_cast %0 : vector<8x8x128xf32> to vector<64x128xf32>
    %c0_2 = arith.constant 0 : index
    %c0_3 = arith.constant 0 : index
    %2 = vector.load %arg1[%c0_2, %c0_3] : memref<128x512xf32, #tpu.memory_space<vmem>>, vector<128x512xf32>
    %cst = arith.constant dense<0.000000e+00> : vector<64x512xf32>
    %3 = tpu.matmul %1, %2, %cst {dimension_numbers = #tpu.dot_dimension_numbers<[1], [0], [0], [1], [0, 0, 1, 1], [], []>} : vector<64x128xf32>, vector<128x512xf32>, vector<64x512xf32> -> vector<64x512xf32>
    %c0_4 = arith.constant 0 : index
    %c0_5 = arith.constant 0 : index
    %4 = vector.load %arg3[%c0_4, %c0_5] : memref<1x512xf32, #tpu.memory_space<vmem>>, vector<1x512xf32>
    %5 = vector.broadcast %4 : vector<1x512xf32> to vector<64x512xf32>
    %6 = arith.addf %3, %5 : vector<64x512xf32>
    %7 = vector.shape_cast %6 : vector<64x512xf32> to vector<8x8x512xf32>
    %c0_6 = arith.constant 0 : index
    %c0_7 = arith.constant 0 : index
    %c0_8 = arith.constant 0 : index
    %8 = vector.load %arg9[%c0_6, %c0_7, %c0_8] : memref<8x8x512xf32, #tpu.memory_space<vmem>>, vector<8x8x512xf32>
    tpu.vector_store %arg9[%c0_6, %c0_7, %c0_8], %7 {strides = array<i32>} : memref<8x8x512xf32, #tpu.memory_space<vmem>>, vector<8x8x512xf32>,
    %c0_9 = arith.constant 0 : index
    %c0_10 = arith.constant 0 : index
    %9 = vector.load %arg4[%c0_9, %c0_10] : memref<8x128xf32, #tpu.memory_space<vmem>>, vector<8x128xf32>
    %c0_11 = arith.constant 0 : index
    %c0_12 = arith.constant 0 : index
    %10 = vector.load %arg5[%c0_11, %c0_12] : memref<8x128xf32, #tpu.memory_space<vmem>>, vector<8x128xf32>
    %c0_13 = arith.constant 0 : index
    %c0_14 = arith.constant 0 : index
    %c0_15 = arith.constant 0 : index
    %11 = vector.load %arg9[%c0_13, %c0_14, %c0_15] : memref<8x8x512xf32, #tpu.memory_space<vmem>>, vector<1x8x512xf32>
    %12 = vector.shape_cast %11 : vector<1x8x512xf32> to vector<8x512xf32>
    %c0_16 = arith.constant 0 : index
    %c0_17 = arith.constant 0 : index
    %13 = vector.load %arg2[%c0_16, %c0_17] : memref<128x512xf32, #tpu.memory_space<vmem>>, vector<128x512xf32>
    %cst_18 = arith.constant dense<0.000000e+00> : vector<8x512xf32>
    %14 = tpu.matmul %9, %13, %cst_18 {dimension_numbers = #tpu.dot_dimension_numbers<[1], [0], [0], [1], [0, 0, 1, 1], [], []>} : vector<8x128xf32>, vector<128x512xf32>, vector<8x512xf32> -> vector<8x512xf32>
    %15 = arith.addf %12, %14 : vector<8x512xf32>
    %16 = vector.extract_strided_slice %15 {offsets = [0, 0], sizes = [8, 384], strides = [1, 1]} : vector<8x512xf32> to vector<8x384xf32>
    %17 = arith.negf %16 : vector<8x384xf32>
    %18 = math.exp %17 : vector<8x384xf32>
    %cst_19 = arith.constant 1.000000e+00 : f32
    %19 = vector.broadcast %cst_19 : f32 to vector<8x384xf32>
    %20 = arith.addf %19, %18 : vector<8x384xf32>
    %21 = arith.divf %19, %20 : vector<8x384xf32>
    %22 = vector.extract_strided_slice %15 {offsets = [0, 384], sizes = [8, 128], strides = [1, 1]} : vector<8x512xf32> to vector<8x128xf32>
    %23 = math.tanh %22 : vector<8x128xf32>
    %24 = vector.extract_strided_slice %21 {offsets = [0, 0], sizes = [8, 128], strides = [1, 1]} : vector<8x384xf32> to vector<8x128xf32>
    %25 = vector.extract_strided_slice %21 {offsets = [0, 128], sizes = [8, 128], strides = [1, 1]} : vector<8x384xf32> to vector<8x128xf32>
    %26 = vector.extract_strided_slice %21 {offsets = [0, 256], sizes = [8, 128], strides = [1, 1]} : vector<8x384xf32> to vector<8x128xf32>
    %27 = arith.mulf %25, %10 : vector<8x128xf32>
    %28 = arith.mulf %24, %23 : vector<8x128xf32>
    %29 = arith.addf %27, %28 : vector<8x128xf32>
    %30 = math.tanh %29 : vector<8x128xf32>
    %31 = arith.mulf %26, %30 : vector<8x128xf32>
    %c0_20 = arith.constant 0 : index
    %c0_21 = arith.constant 0 : index
    %c0_22 = arith.constant 0 : index
    %32 = vector.load %arg6[%c0_20, %c0_21, %c0_22] : memref<8x8x128xf32, #tpu.memory_space<vmem>>, vector<1x8x128xf32>
    %33 = vector.shape_cast %32 : vector<1x8x128xf32> to vector<8x128xf32>
    %34 = vector.shape_cast %31 : vector<8x128xf32> to vector<1x8x128xf32>
    tpu.vector_store %arg6[%c0_20, %c0_21, %c0_22], %34 {strides = array<i32>} : memref<8x8x128xf32, #tpu.memory_space<vmem>>, vector<1x8x128xf32>,
    %c1 = arith.constant 1 : index
    %c0_23 = arith.constant 0 : index
    %c0_24 = arith.constant 0 : index
    %35 = vector.load %arg9[%c1, %c0_23, %c0_24] : memref<8x8x512xf32, #tpu.memory_space<vmem>>, vector<1x8x512xf32>
    %36 = vector.shape_cast %35 : vector<1x8x512xf32> to vector<8x512xf32>
    %c0_25 = arith.constant 0 : index
    %c0_26 = arith.constant 0 : index
    %37 = vector.load %arg2[%c0_25, %c0_26] : memref<128x512xf32, #tpu.memory_space<vmem>>, vector<128x512xf32>
    %cst_27 = arith.constant dense<0.000000e+00> : vector<8x512xf32>
    %38 = tpu.matmul %31, %37, %cst_27 {dimension_numbers = #tpu.dot_dimension_numbers<[1], [0], [0], [1], [0, 0, 1, 1], [], []>} : vector<8x128xf32>, vector<128x512xf32>, vector<8x512xf32> -> vector<8x512xf32>
    %39 = arith.addf %36, %38 : vector<8x512xf32>
    %40 = vector.extract_strided_slice %39 {offsets = [0, 0], sizes = [8, 384], strides = [1, 1]} : vector<8x512xf32> to vector<8x384xf32>
    %41 = arith.negf %40 : vector<8x384xf32>
    %42 = math.exp %41 : vector<8x384xf32>
    %cst_28 = arith.constant 1.000000e+00 : f32
    %43 = vector.broadcast %cst_28 : f32 to vector<8x384xf32>
    %44 = arith.addf %43, %42 : vector<8x384xf32>
    %45 = arith.divf %43, %44 : vector<8x384xf32>
    %46 = vector.extract_strided_slice %39 {offsets = [0, 384], sizes = [8, 128], strides = [1, 1]} : vector<8x512xf32> to vector<8x128xf32>
    %47 = math.tanh %46 : vector<8x128xf32>
    %48 = vector.extract_strided_slice %45 {offsets = [0, 0], sizes = [8, 128], strides = [1, 1]} : vector<8x384xf32> to vector<8x128xf32>
    %49 = vector.extract_strided_slice %45 {offsets = [0, 128], sizes = [8, 128], strides = [1, 1]} : vector<8x384xf32> to vector<8x128xf32>
    %50 = vector.extract_strided_slice %45 {offsets = [0, 256], sizes = [8, 128], strides = [1, 1]} : vector<8x384xf32> to vector<8x128xf32>
    %51 = arith.mulf %49, %29 : vector<8x128xf32>
    %52 = arith.mulf %48, %47 : vector<8x128xf32>
    %53 = arith.addf %51, %52 : vector<8x128xf32>
    %54 = math.tanh %53 : vector<8x128xf32>
    %55 = arith.mulf %50, %54 : vector<8x128xf32>
    %c1_29 = arith.constant 1 : index
    %c0_30 = arith.constant 0 : index
    %c0_31 = arith.constant 0 : index
    %56 = vector.load %arg6[%c1_29, %c0_30, %c0_31] : memref<8x8x128xf32, #tpu.memory_space<vmem>>, vector<1x8x128xf32>
    %57 = vector.shape_cast %56 : vector<1x8x128xf32> to vector<8x128xf32>
    %58 = vector.shape_cast %55 : vector<8x128xf32> to vector<1x8x128xf32>
    tpu.vector_store %arg6[%c1_29, %c0_30, %c0_31], %58 {strides = array<i32>} : memref<8x8x128xf32, #tpu.memory_space<vmem>>, vector<1x8x128xf32>,
    %c2 = arith.constant 2 : index
    %c0_32 = arith.constant 0 : index
    %c0_33 = arith.constant 0 : index
    %59 = vector.load %arg9[%c2, %c0_32, %c0_33] : memref<8x8x512xf32, #tpu.memory_space<vmem>>, vector<1x8x512xf32>
    %60 = vector.shape_cast %59 : vector<1x8x512xf32> to vector<8x512xf32>
    %c0_34 = arith.constant 0 : index
    %c0_35 = arith.constant 0 : index
    %61 = vector.load %arg2[%c0_34, %c0_35] : memref<128x512xf32, #tpu.memory_space<vmem>>, vector<128x512xf32>
    %cst_36 = arith.constant dense<0.000000e+00> : vector<8x512xf32>
    %62 = tpu.matmul %55, %61, %cst_36 {dimension_numbers = #tpu.dot_dimension_numbers<[1], [0], [0], [1], [0, 0, 1, 1], [], []>} : vector<8x128xf32>, vector<128x512xf32>, vector<8x512xf32> -> vector<8x512xf32>
    %63 = arith.addf %60, %62 : vector<8x512xf32>
    %64 = vector.extract_strided_slice %63 {offsets = [0, 0], sizes = [8, 384], strides = [1, 1]} : vector<8x512xf32> to vector<8x384xf32>
    %65 = arith.negf %64 : vector<8x384xf32>
    %66 = math.exp %65 : vector<8x384xf32>
    %cst_37 = arith.constant 1.000000e+00 : f32
    %67 = vector.broadcast %cst_37 : f32 to vector<8x384xf32>
    %68 = arith.addf %67, %66 : vector<8x384xf32>
    %69 = arith.divf %67, %68 : vector<8x384xf32>
    %70 = vector.extract_strided_slice %63 {offsets = [0, 384], sizes = [8, 128], strides = [1, 1]} : vector<8x512xf32> to vector<8x128xf32>
    %71 = math.tanh %70 : vector<8x128xf32>
    %72 = vector.extract_strided_slice %69 {offsets = [0, 0], sizes = [8, 128], strides = [1, 1]} : vector<8x384xf32> to vector<8x128xf32>
    %73 = vector.extract_strided_slice %69 {offsets = [0, 128], sizes = [8, 128], strides = [1, 1]} : vector<8x384xf32> to vector<8x128xf32>
    %74 = vector.extract_strided_slice %69 {offsets = [0, 256], sizes = [8, 128], strides = [1, 1]} : vector<8x384xf32> to vector<8x128xf32>
    %75 = arith.mulf %73, %53 : vector<8x128xf32>
    %76 = arith.mulf %72, %71 : vector<8x128xf32>
    %77 = arith.addf %75, %76 : vector<8x128xf32>
    %78 = math.tanh %77 : vector<8x128xf32>
    %79 = arith.mulf %74, %78 : vector<8x128xf32>
    %c2_38 = arith.constant 2 : index
    %c0_39 = arith.constant 0 : index
    %c0_40 = arith.constant 0 : index
    %80 = vector.load %arg6[%c2_38, %c0_39, %c0_40] : memref<8x8x128xf32, #tpu.memory_space<vmem>>, vector<1x8x128xf32>
    %81 = vector.shape_cast %80 : vector<1x8x128xf32> to vector<8x128xf32>
    %82 = vector.shape_cast %79 : vector<8x128xf32> to vector<1x8x128xf32>
    tpu.vector_store %arg6[%c2_38, %c0_39, %c0_40], %82 {strides = array<i32>} : memref<8x8x128xf32, #tpu.memory_space<vmem>>, vector<1x8x128xf32>,
    %c3 = arith.constant 3 : index
    %c0_41 = arith.constant 0 : index
    %c0_42 = arith.constant 0 : index
    %83 = vector.load %arg9[%c3, %c0_41, %c0_42] : memref<8x8x512xf32, #tpu.memory_space<vmem>>, vector<1x8x512xf32>
    %84 = vector.shape_cast %83 : vector<1x8x512xf32> to vector<8x512xf32>
    %c0_43 = arith.constant 0 : index
    %c0_44 = arith.constant 0 : index
    %85 = vector.load %arg2[%c0_43, %c0_44] : memref<128x512xf32, #tpu.memory_space<vmem>>, vector<128x512xf32>
    %cst_45 = arith.constant dense<0.000000e+00> : vector<8x512xf32>
    %86 = tpu.matmul %79, %85, %cst_45 {dimension_numbers = #tpu.dot_dimension_numbers<[1], [0], [0], [1], [0, 0, 1, 1], [], []>} : vector<8x128xf32>, vector<128x512xf32>, vector<8x512xf32> -> vector<8x512xf32>
    %87 = arith.addf %84, %86 : vector<8x512xf32>
    %88 = vector.extract_strided_slice %87 {offsets = [0, 0], sizes = [8, 384], strides = [1, 1]} : vector<8x512xf32> to vector<8x384xf32>
    %89 = arith.negf %88 : vector<8x384xf32>
    %90 = math.exp %89 : vector<8x384xf32>
    %cst_46 = arith.constant 1.000000e+00 : f32
    %91 = vector.broadcast %cst_46 : f32 to vector<8x384xf32>
    %92 = arith.addf %91, %90 : vector<8x384xf32>
    %93 = arith.divf %91, %92 : vector<8x384xf32>
    %94 = vector.extract_strided_slice %87 {offsets = [0, 384], sizes = [8, 128], strides = [1, 1]} : vector<8x512xf32> to vector<8x128xf32>
    %95 = math.tanh %94 : vector<8x128xf32>
    %96 = vector.extract_strided_slice %93 {offsets = [0, 0], sizes = [8, 128], strides = [1, 1]} : vector<8x384xf32> to vector<8x128xf32>
    %97 = vector.extract_strided_slice %93 {offsets = [0, 128], sizes = [8, 128], strides = [1, 1]} : vector<8x384xf32> to vector<8x128xf32>
    %98 = vector.extract_strided_slice %93 {offsets = [0, 256], sizes = [8, 128], strides = [1, 1]} : vector<8x384xf32> to vector<8x128xf32>
    %99 = arith.mulf %97, %77 : vector<8x128xf32>
    %100 = arith.mulf %96, %95 : vector<8x128xf32>
    %101 = arith.addf %99, %100 : vector<8x128xf32>
    %102 = math.tanh %101 : vector<8x128xf32>
    %103 = arith.mulf %98, %102 : vector<8x128xf32>
    %c3_47 = arith.constant 3 : index
    %c0_48 = arith.constant 0 : index
    %c0_49 = arith.constant 0 : index
    %104 = vector.load %arg6[%c3_47, %c0_48, %c0_49] : memref<8x8x128xf32, #tpu.memory_space<vmem>>, vector<1x8x128xf32>
    %105 = vector.shape_cast %104 : vector<1x8x128xf32> to vector<8x128xf32>
    %106 = vector.shape_cast %103 : vector<8x128xf32> to vector<1x8x128xf32>
    tpu.vector_store %arg6[%c3_47, %c0_48, %c0_49], %106 {strides = array<i32>} : memref<8x8x128xf32, #tpu.memory_space<vmem>>, vector<1x8x128xf32>,
    %c4 = arith.constant 4 : index
    %c0_50 = arith.constant 0 : index
    %c0_51 = arith.constant 0 : index
    %107 = vector.load %arg9[%c4, %c0_50, %c0_51] : memref<8x8x512xf32, #tpu.memory_space<vmem>>, vector<1x8x512xf32>
    %108 = vector.shape_cast %107 : vector<1x8x512xf32> to vector<8x512xf32>
    %c0_52 = arith.constant 0 : index
    %c0_53 = arith.constant 0 : index
    %109 = vector.load %arg2[%c0_52, %c0_53] : memref<128x512xf32, #tpu.memory_space<vmem>>, vector<128x512xf32>
    %cst_54 = arith.constant dense<0.000000e+00> : vector<8x512xf32>
    %110 = tpu.matmul %103, %109, %cst_54 {dimension_numbers = #tpu.dot_dimension_numbers<[1], [0], [0], [1], [0, 0, 1, 1], [], []>} : vector<8x128xf32>, vector<128x512xf32>, vector<8x512xf32> -> vector<8x512xf32>
    %111 = arith.addf %108, %110 : vector<8x512xf32>
    %112 = vector.extract_strided_slice %111 {offsets = [0, 0], sizes = [8, 384], strides = [1, 1]} : vector<8x512xf32> to vector<8x384xf32>
    %113 = arith.negf %112 : vector<8x384xf32>
    %114 = math.exp %113 : vector<8x384xf32>
    %cst_55 = arith.constant 1.000000e+00 : f32
    %115 = vector.broadcast %cst_55 : f32 to vector<8x384xf32>
    %116 = arith.addf %115, %114 : vector<8x384xf32>
    %117 = arith.divf %115, %116 : vector<8x384xf32>
    %118 = vector.extract_strided_slice %111 {offsets = [0, 384], sizes = [8, 128], strides = [1, 1]} : vector<8x512xf32> to vector<8x128xf32>
    %119 = math.tanh %118 : vector<8x128xf32>
    %120 = vector.extract_strided_slice %117 {offsets = [0, 0], sizes = [8, 128], strides = [1, 1]} : vector<8x384xf32> to vector<8x128xf32>
    %121 = vector.extract_strided_slice %117 {offsets = [0, 128], sizes = [8, 128], strides = [1, 1]} : vector<8x384xf32> to vector<8x128xf32>
    %122 = vector.extract_strided_slice %117 {offsets = [0, 256], sizes = [8, 128], strides = [1, 1]} : vector<8x384xf32> to vector<8x128xf32>
    %123 = arith.mulf %121, %101 : vector<8x128xf32>
    %124 = arith.mulf %120, %119 : vector<8x128xf32>
    %125 = arith.addf %123, %124 : vector<8x128xf32>
    %126 = math.tanh %125 : vector<8x128xf32>
    %127 = arith.mulf %122, %126 : vector<8x128xf32>
    %c4_56 = arith.constant 4 : index
    %c0_57 = arith.constant 0 : index
    %c0_58 = arith.constant 0 : index
    %128 = vector.load %arg6[%c4_56, %c0_57, %c0_58] : memref<8x8x128xf32, #tpu.memory_space<vmem>>, vector<1x8x128xf32>
    %129 = vector.shape_cast %128 : vector<1x8x128xf32> to vector<8x128xf32>
    %130 = vector.shape_cast %127 : vector<8x128xf32> to vector<1x8x128xf32>
    tpu.vector_store %arg6[%c4_56, %c0_57, %c0_58], %130 {strides = array<i32>} : memref<8x8x128xf32, #tpu.memory_space<vmem>>, vector<1x8x128xf32>,
    %c5 = arith.constant 5 : index
    %c0_59 = arith.constant 0 : index
    %c0_60 = arith.constant 0 : index
    %131 = vector.load %arg9[%c5, %c0_59, %c0_60] : memref<8x8x512xf32, #tpu.memory_space<vmem>>, vector<1x8x512xf32>
    %132 = vector.shape_cast %131 : vector<1x8x512xf32> to vector<8x512xf32>
    %c0_61 = arith.constant 0 : index
    %c0_62 = arith.constant 0 : index
    %133 = vector.load %arg2[%c0_61, %c0_62] : memref<128x512xf32, #tpu.memory_space<vmem>>, vector<128x512xf32>
    %cst_63 = arith.constant dense<0.000000e+00> : vector<8x512xf32>
    %134 = tpu.matmul %127, %133, %cst_63 {dimension_numbers = #tpu.dot_dimension_numbers<[1], [0], [0], [1], [0, 0, 1, 1], [], []>} : vector<8x128xf32>, vector<128x512xf32>, vector<8x512xf32> -> vector<8x512xf32>
    %135 = arith.addf %132, %134 : vector<8x512xf32>
    %136 = vector.extract_strided_slice %135 {offsets = [0, 0], sizes = [8, 384], strides = [1, 1]} : vector<8x512xf32> to vector<8x384xf32>
    %137 = arith.negf %136 : vector<8x384xf32>
    %138 = math.exp %137 : vector<8x384xf32>
    %cst_64 = arith.constant 1.000000e+00 : f32
    %139 = vector.broadcast %cst_64 : f32 to vector<8x384xf32>
    %140 = arith.addf %139, %138 : vector<8x384xf32>
    %141 = arith.divf %139, %140 : vector<8x384xf32>
    %142 = vector.extract_strided_slice %135 {offsets = [0, 384], sizes = [8, 128], strides = [1, 1]} : vector<8x512xf32> to vector<8x128xf32>
    %143 = math.tanh %142 : vector<8x128xf32>
    %144 = vector.extract_strided_slice %141 {offsets = [0, 0], sizes = [8, 128], strides = [1, 1]} : vector<8x384xf32> to vector<8x128xf32>
    %145 = vector.extract_strided_slice %141 {offsets = [0, 128], sizes = [8, 128], strides = [1, 1]} : vector<8x384xf32> to vector<8x128xf32>
    %146 = vector.extract_strided_slice %141 {offsets = [0, 256], sizes = [8, 128], strides = [1, 1]} : vector<8x384xf32> to vector<8x128xf32>
    %147 = arith.mulf %145, %125 : vector<8x128xf32>
    %148 = arith.mulf %144, %143 : vector<8x128xf32>
    %149 = arith.addf %147, %148 : vector<8x128xf32>
    %150 = math.tanh %149 : vector<8x128xf32>
    %151 = arith.mulf %146, %150 : vector<8x128xf32>
    %c5_65 = arith.constant 5 : index
    %c0_66 = arith.constant 0 : index
    %c0_67 = arith.constant 0 : index
    %152 = vector.load %arg6[%c5_65, %c0_66, %c0_67] : memref<8x8x128xf32, #tpu.memory_space<vmem>>, vector<1x8x128xf32>
    %153 = vector.shape_cast %152 : vector<1x8x128xf32> to vector<8x128xf32>
    %154 = vector.shape_cast %151 : vector<8x128xf32> to vector<1x8x128xf32>
    tpu.vector_store %arg6[%c5_65, %c0_66, %c0_67], %154 {strides = array<i32>} : memref<8x8x128xf32, #tpu.memory_space<vmem>>, vector<1x8x128xf32>,
    %c6 = arith.constant 6 : index
    %c0_68 = arith.constant 0 : index
    %c0_69 = arith.constant 0 : index
    %155 = vector.load %arg9[%c6, %c0_68, %c0_69] : memref<8x8x512xf32, #tpu.memory_space<vmem>>, vector<1x8x512xf32>
    %156 = vector.shape_cast %155 : vector<1x8x512xf32> to vector<8x512xf32>
    %c0_70 = arith.constant 0 : index
    %c0_71 = arith.constant 0 : index
    %157 = vector.load %arg2[%c0_70, %c0_71] : memref<128x512xf32, #tpu.memory_space<vmem>>, vector<128x512xf32>
    %cst_72 = arith.constant dense<0.000000e+00> : vector<8x512xf32>
    %158 = tpu.matmul %151, %157, %cst_72 {dimension_numbers = #tpu.dot_dimension_numbers<[1], [0], [0], [1], [0, 0, 1, 1], [], []>} : vector<8x128xf32>, vector<128x512xf32>, vector<8x512xf32> -> vector<8x512xf32>
    %159 = arith.addf %156, %158 : vector<8x512xf32>
    %160 = vector.extract_strided_slice %159 {offsets = [0, 0], sizes = [8, 384], strides = [1, 1]} : vector<8x512xf32> to vector<8x384xf32>
    %161 = arith.negf %160 : vector<8x384xf32>
    %162 = math.exp %161 : vector<8x384xf32>
    %cst_73 = arith.constant 1.000000e+00 : f32
    %163 = vector.broadcast %cst_73 : f32 to vector<8x384xf32>
    %164 = arith.addf %163, %162 : vector<8x384xf32>
    %165 = arith.divf %163, %164 : vector<8x384xf32>
    %166 = vector.extract_strided_slice %159 {offsets = [0, 384], sizes = [8, 128], strides = [1, 1]} : vector<8x512xf32> to vector<8x128xf32>
    %167 = math.tanh %166 : vector<8x128xf32>
    %168 = vector.extract_strided_slice %165 {offsets = [0, 0], sizes = [8, 128], strides = [1, 1]} : vector<8x384xf32> to vector<8x128xf32>
    %169 = vector.extract_strided_slice %165 {offsets = [0, 128], sizes = [8, 128], strides = [1, 1]} : vector<8x384xf32> to vector<8x128xf32>
    %170 = vector.extract_strided_slice %165 {offsets = [0, 256], sizes = [8, 128], strides = [1, 1]} : vector<8x384xf32> to vector<8x128xf32>
    %171 = arith.mulf %169, %149 : vector<8x128xf32>
    %172 = arith.mulf %168, %167 : vector<8x128xf32>
    %173 = arith.addf %171, %172 : vector<8x128xf32>
    %174 = math.tanh %173 : vector<8x128xf32>
    %175 = arith.mulf %170, %174 : vector<8x128xf32>
    %c6_74 = arith.constant 6 : index
    %c0_75 = arith.constant 0 : index
    %c0_76 = arith.constant 0 : index
    %176 = vector.load %arg6[%c6_74, %c0_75, %c0_76] : memref<8x8x128xf32, #tpu.memory_space<vmem>>, vector<1x8x128xf32>
    %177 = vector.shape_cast %176 : vector<1x8x128xf32> to vector<8x128xf32>
    %178 = vector.shape_cast %175 : vector<8x128xf32> to vector<1x8x128xf32>
    tpu.vector_store %arg6[%c6_74, %c0_75, %c0_76], %178 {strides = array<i32>} : memref<8x8x128xf32, #tpu.memory_space<vmem>>, vector<1x8x128xf32>,
    %c7 = arith.constant 7 : index
    %c0_77 = arith.constant 0 : index
    %c0_78 = arith.constant 0 : index
    %179 = vector.load %arg9[%c7, %c0_77, %c0_78] : memref<8x8x512xf32, #tpu.memory_space<vmem>>, vector<1x8x512xf32>
    %180 = vector.shape_cast %179 : vector<1x8x512xf32> to vector<8x512xf32>
    %c0_79 = arith.constant 0 : index
    %c0_80 = arith.constant 0 : index
    %181 = vector.load %arg2[%c0_79, %c0_80] : memref<128x512xf32, #tpu.memory_space<vmem>>, vector<128x512xf32>
    %cst_81 = arith.constant dense<0.000000e+00> : vector<8x512xf32>
    %182 = tpu.matmul %175, %181, %cst_81 {dimension_numbers = #tpu.dot_dimension_numbers<[1], [0], [0], [1], [0, 0, 1, 1], [], []>} : vector<8x128xf32>, vector<128x512xf32>, vector<8x512xf32> -> vector<8x512xf32>
    %183 = arith.addf %180, %182 : vector<8x512xf32>
    %184 = vector.extract_strided_slice %183 {offsets = [0, 0], sizes = [8, 384], strides = [1, 1]} : vector<8x512xf32> to vector<8x384xf32>
    %185 = arith.negf %184 : vector<8x384xf32>
    %186 = math.exp %185 : vector<8x384xf32>
    %cst_82 = arith.constant 1.000000e+00 : f32
    %187 = vector.broadcast %cst_82 : f32 to vector<8x384xf32>
    %188 = arith.addf %187, %186 : vector<8x384xf32>
    %189 = arith.divf %187, %188 : vector<8x384xf32>
    %190 = vector.extract_strided_slice %183 {offsets = [0, 384], sizes = [8, 128], strides = [1, 1]} : vector<8x512xf32> to vector<8x128xf32>
    %191 = math.tanh %190 : vector<8x128xf32>
    %192 = vector.extract_strided_slice %189 {offsets = [0, 0], sizes = [8, 128], strides = [1, 1]} : vector<8x384xf32> to vector<8x128xf32>
    %193 = vector.extract_strided_slice %189 {offsets = [0, 128], sizes = [8, 128], strides = [1, 1]} : vector<8x384xf32> to vector<8x128xf32>
    %194 = vector.extract_strided_slice %189 {offsets = [0, 256], sizes = [8, 128], strides = [1, 1]} : vector<8x384xf32> to vector<8x128xf32>
    %195 = arith.mulf %193, %173 : vector<8x128xf32>
    %196 = arith.mulf %192, %191 : vector<8x128xf32>
    %197 = arith.addf %195, %196 : vector<8x128xf32>
    %198 = math.tanh %197 : vector<8x128xf32>
    %199 = arith.mulf %194, %198 : vector<8x128xf32>
    %c7_83 = arith.constant 7 : index
    %c0_84 = arith.constant 0 : index
    %c0_85 = arith.constant 0 : index
    %200 = vector.load %arg6[%c7_83, %c0_84, %c0_85] : memref<8x8x128xf32, #tpu.memory_space<vmem>>, vector<1x8x128xf32>
    %201 = vector.shape_cast %200 : vector<1x8x128xf32> to vector<8x128xf32>
    %202 = vector.shape_cast %199 : vector<8x128xf32> to vector<1x8x128xf32>
    tpu.vector_store %arg6[%c7_83, %c0_84, %c0_85], %202 {strides = array<i32>} : memref<8x8x128xf32, #tpu.memory_space<vmem>>, vector<1x8x128xf32>,
    %c0_86 = arith.constant 0 : index
    %c0_87 = arith.constant 0 : index
    %203 = vector.load %arg7[%c0_86, %c0_87] : memref<8x128xf32, #tpu.memory_space<vmem>>, vector<8x128xf32>
    tpu.vector_store %arg7[%c0_86, %c0_87], %199 {strides = array<i32>} : memref<8x128xf32, #tpu.memory_space<vmem>>, vector<8x128xf32>,
    %c0_88 = arith.constant 0 : index
    %c0_89 = arith.constant 0 : index
    %204 = vector.load %arg8[%c0_88, %c0_89] : memref<8x128xf32, #tpu.memory_space<vmem>>, vector<8x128xf32>
    tpu.vector_store %arg8[%c0_88, %c0_89], %197 {strides = array<i32>} : memref<8x128xf32, #tpu.memory_space<vmem>>, vector<8x128xf32>,
    return
  }
}

</mosaic_0001>

<llo_original>
// kernel: lstm_bart_forward.1
$region0: #{lstm_bart_forward.1}
  #allocation0 [shape = 'u32[]', space=smem, size = 0x4, offset = 0x4, fixed_abs, tag = 'smem constant byte address 0x4 - core index']
  #allocation1 [shape = 'u32[144,128]{1,0:T(1,128)}', space=vmem, size = 0x12000, scoped, tag = 'internal scratch']
  #allocation2 [shape = 'f32[8,8,512]{2,1,0:T(8,128)}', space=vmem, size = 0x20000, scoped, tag = 'scratch operand']
  %s0 = inlined_call_operand.vmem [shape: f32[8,8,128], index: 0, kind: input, shape index: {}]
  %s1 = inlined_call_operand.vmem [shape: f32[128,512], index: 1, kind: input, shape index: {}]
  %s2 = inlined_call_operand.vmem [shape: f32[128,512], index: 2, kind: input, shape index: {}]
  %s3 = inlined_call_operand.vmem [shape: f32[1,512], index: 3, kind: input, shape index: {}]
  %s4 = inlined_call_operand.vmem [shape: f32[8,128], index: 4, kind: input, shape index: {}]
  %s5 = inlined_call_operand.vmem [shape: f32[8,128], index: 5, kind: input, shape index: {}]
  %s6 = inlined_call_operand.vmem [shape: f32[8,8,128], index: 6, kind: output, shape index: {0}]
  %s7 = inlined_call_operand.hbm [shape: f32[8,128], index: 7, kind: output, shape index: {1}]
  %s8 = inlined_call_operand.hbm [shape: f32[8,128], index: 8, kind: output, shape index: {2}]
  %9 = xla_tuple %s6, %s7, %s8
  %s10 = sld [smem:[#allocation0]]
  $region50: #{lstm_bart_forward.1} parent=0
    _
  %s12 = ssub.s32 1, %s10
  %s13 = scalar_select 0, %s12, %s10
  $region1: #{lstm_bart_forward.1} parent=0
    #allocation3 [shape = 'u8[4096]{0}', space=vmem, size = 0x1000, scoped, tag = 'output window, operand 1, single buffered']
    #allocation4 [shape = 's32[1]{0}', space=sflag, size = 0x4, scoped, tag = 'scoped memory for lstm_bart_forward.1']
    #allocation5 [shape = 'u8[4096]{0}', space=vmem, size = 0x1000, scoped, tag = 'output window, operand 2, single buffered']
    #allocation6 [shape = 's32[1]{0}', space=sflag, size = 0x4, scoped, tag = 'scoped memory for lstm_bart_forward.1']
    %14 = vsyncpa [#allocation4], 0
    %15 = vsyncpa [#allocation6], 0
    // Predicated region
    $region2: #{lstm_bart_forward.1} parent=1 // pred_check
      _
    $region3: #{lstm_bart_forward.1} parent=1 // pred_check_branch
      %17 = sbr.rel (0) target = $region5
    $region4: #{lstm_bart_forward.1} parent=1 // pred_region
      _
    $region5: #{lstm_bart_forward.1} parent=1 // pred_fallthru
      _
    // Predicated region
    $region6: #{lstm_bart_forward.1} parent=1 // pred_check
      _
    $region7: #{lstm_bart_forward.1} parent=1 // pred_check_branch
      %19 = sbr.rel (0) target = $region9
    $region8: #{lstm_bart_forward.1} parent=1 // pred_region
      _
    $region9: #{lstm_bart_forward.1} parent=1 // pred_fallthru
      _
    // Predicated region
    $region10: #{lstm_bart_forward.1} parent=1 // pred_check
      _
    $region11: #{lstm_bart_forward.1} parent=1 // pred_check_branch
      %21 = sbr.rel (0) target = $region13
    $region12: #{lstm_bart_forward.1} parent=1 // pred_region
      _
    $region13: #{lstm_bart_forward.1} parent=1 // pred_fallthru
      _
    // Predicated region
    $region14: #{lstm_bart_forward.1} parent=1 // pred_check
      _
    $region15: #{lstm_bart_forward.1} parent=1 // pred_check_branch
      %23 = sbr.rel (0) target = $region17
    $region16: #{lstm_bart_forward.1} parent=1 // pred_region
      _
    $region17: #{lstm_bart_forward.1} parent=1 // pred_fallthru
      _
    // Predicated region
    $region18: #{lstm_bart_forward.1} parent=1 // pred_check
      _
    $region19: #{lstm_bart_forward.1} parent=1 // pred_check_branch
      %25 = sbr.rel (0) target = $region21
    $region20: #{lstm_bart_forward.1} parent=1 // pred_region
      _
    $region21: #{lstm_bart_forward.1} parent=1 // pred_fallthru
      _
    // Predicated region
    $region22: #{lstm_bart_forward.1} parent=1 // pred_check
      _
    $region23: #{lstm_bart_forward.1} parent=1 // pred_check_branch
      %27 = sbr.rel (0) target = $region25
    $region24: #{lstm_bart_forward.1} parent=1 // pred_region
      _
    $region25: #{lstm_bart_forward.1} parent=1 // pred_fallthru
      _
    %v28 = vld [vmem:[%s0] sm:$0xff]
    %v29 = vld [vmem:[%s0 + $0x8] sm:$0xff]
    %v30 = vld [vmem:[%s0 + $0x10] sm:$0xff]
    %v31 = vld [vmem:[%s0 + $0x18] sm:$0xff]
    %v32 = vld [vmem:[%s0 + $0x20] sm:$0xff]
    %v33 = vld [vmem:[%s0 + $0x28] sm:$0xff]
    %v34 = vld [vmem:[%s0 + $0x30] sm:$0xff]
    %v35 = vld [vmem:[%s0 + $0x38] sm:$0xff]
    %v36 = vld [vmem:[%s1] sm:$0xff]
    %v37 = vld [vmem:[%s1 + $0x8] sm:$0xff]
    %v38 = vld [vmem:[%s1 + $0x10] sm:$0xff]
    %v39 = vld [vmem:[%s1 + $0x18] sm:$0xff]
    %v40 = vld [vmem:[%s1 + $0x20] sm:$0xff]
    %v41 = vld [vmem:[%s1 + $0x28] sm:$0xff]
    %v42 = vld [vmem:[%s1 + $0x30] sm:$0xff]
    %v43 = vld [vmem:[%s1 + $0x38] sm:$0xff]
    %v44 = vld [vmem:[%s1 + $0x40] sm:$0xff]
    %v45 = vld [vmem:[%s1 + $0x48] sm:$0xff]
    %v46 = vld [vmem:[%s1 + $0x50] sm:$0xff]
    %v47 = vld [vmem:[%s1 + $0x58] sm:$0xff]
    %v48 = vld [vmem:[%s1 + $0x60] sm:$0xff]
    %v49 = vld [vmem:[%s1 + $0x68] sm:$0xff]
    %v50 = vld [vmem:[%s1 + $0x70] sm:$0xff]
    %v51 = vld [vmem:[%s1 + $0x78] sm:$0xff]
    %v52 = vld [vmem:[%s1 + $0x80] sm:$0xff]
    %v53 = vld [vmem:[%s1 + $0x88] sm:$0xff]
    %v54 = vld [vmem:[%s1 + $0x90] sm:$0xff]
    %v55 = vld [vmem:[%s1 + $0x98] sm:$0xff]
    %v56 = vld [vmem:[%s1 + $0xa0] sm:$0xff]
    %v57 = vld [vmem:[%s1 + $0xa8] sm:$0xff]
    %v58 = vld [vmem:[%s1 + $0xb0] sm:$0xff]
    %v59 = vld [vmem:[%s1 + $0xb8] sm:$0xff]
    %v60 = vld [vmem:[%s1 + $0xc0] sm:$0xff]
    %v61 = vld [vmem:[%s1 + $0xc8] sm:$0xff]
    %v62 = vld [vmem:[%s1 + $0xd0] sm:$0xff]
    %v63 = vld [vmem:[%s1 + $0xd8] sm:$0xff]
    %v64 = vld [vmem:[%s1 + $0xe0] sm:$0xff]
    %v65 = vld [vmem:[%s1 + $0xe8] sm:$0xff]
    %v66 = vld [vmem:[%s1 + $0xf0] sm:$0xff]
    %v67 = vld [vmem:[%s1 + $0xf8] sm:$0xff]
    %v68 = vld [vmem:[%s1 + $0x100] sm:$0xff]
    %v69 = vld [vmem:[%s1 + $0x108] sm:$0xff]
    %v70 = vld [vmem:[%s1 + $0x110] sm:$0xff]
    %v71 = vld [vmem:[%s1 + $0x118] sm:$0xff]
    %v72 = vld [vmem:[%s1 + $0x120] sm:$0xff]
    %v73 = vld [vmem:[%s1 + $0x128] sm:$0xff]
    %v74 = vld [vmem:[%s1 + $0x130] sm:$0xff]
    %v75 = vld [vmem:[%s1 + $0x138] sm:$0xff]
    %v76 = vld [vmem:[%s1 + $0x140] sm:$0xff]
    %v77 = vld [vmem:[%s1 + $0x148] sm:$0xff]
    %v78 = vld [vmem:[%s1 + $0x150] sm:$0xff]
    %v79 = vld [vmem:[%s1 + $0x158] sm:$0xff]
    %v80 = vld [vmem:[%s1 + $0x160] sm:$0xff]
    %v81 = vld [vmem:[%s1 + $0x168] sm:$0xff]
    %v82 = vld [vmem:[%s1 + $0x170] sm:$0xff]
    %v83 = vld [vmem:[%s1 + $0x178] sm:$0xff]
    %v84 = vld [vmem:[%s1 + $0x180] sm:$0xff]
    %v85 = vld [vmem:[%s1 + $0x188] sm:$0xff]
    %v86 = vld [vmem:[%s1 + $0x190] sm:$0xff]
    %v87 = vld [vmem:[%s1 + $0x198] sm:$0xff]
    %v88 = vld [vmem:[%s1 + $0x1a0] sm:$0xff]
    %v89 = vld [vmem:[%s1 + $0x1a8] sm:$0xff]
    %v90 = vld [vmem:[%s1 + $0x1b0] sm:$0xff]
    %v91 = vld [vmem:[%s1 + $0x1b8] sm:$0xff]
    %v92 = vld [vmem:[%s1 + $0x1c0] sm:$0xff]
    %v93 = vld [vmem:[%s1 + $0x1c8] sm:$0xff]
    %v94 = vld [vmem:[%s1 + $0x1d0] sm:$0xff]
    %v95 = vld [vmem:[%s1 + $0x1d8] sm:$0xff]
    %v96 = vld [vmem:[%s1 + $0x1e0] sm:$0xff]
    %v97 = vld [vmem:[%s1 + $0x1e8] sm:$0xff]
    %v98 = vld [vmem:[%s1 + $0x1f0] sm:$0xff]
    %v99 = vld [vmem:[%s1 + $0x1f8] sm:$0xff]
    %v100 = vld [vmem:[%s3] sm:$0xf]
    %v102 = vlaneseq
    %v103 = vshrl.u32 %v102, 7
    %v104 = vsub.s32 0, %v103
    %v105 = vrot.slane %v100, %v104
    %v106 = vlaneseq
    %v107 = vshrl.u32 %v106, 7
    %v108 = vsub.s32 1, %v107
    %v109 = vrot.slane %v100, %v108
    %v110 = vlaneseq
    %v111 = vshrl.u32 %v110, 7
    %v112 = vsub.s32 2, %v111
    %v113 = vrot.slane %v100, %v112
    %v114 = vlaneseq
    %v115 = vshrl.u32 %v114, 7
    %v116 = vsub.s32 3, %v115
    %v117 = vrot.slane %v100, %v116
    %122 = vmatprep.subr.mxu0 %v37
    %123 = vmatpush1.msra.mxu0 %v36
    %124 = vmatprep.subr.mxu0 %v41
    %125 = vmatpush1.msra.mxu0 %v40
    %126 = vmatprep.subr.mxu0 %v45
    %127 = vmatpush1.msra.mxu0 %v44
    %128 = vmatprep.subr.mxu0 %v49
    %129 = vmatpush1.msra.mxu0 %v48
    %130 = vmatprep.subr.mxu0 %v53
    %131 = vmatpush1.msra.mxu0 %v52
    %132 = vmatprep.subr.mxu0 %v57
    %133 = vmatpush1.msra.mxu0 %v56
    %134 = vmatprep.subr.mxu0 %v61
    %135 = vmatpush1.msra.mxu0 %v60
    %136 = vmatprep.subr.mxu0 %v65
    %137 = vmatpush1.msra.mxu0 %v64
    %138 = vmatprep.subr.mxu0 %v69
    %139 = vmatpush1.msra.mxu0 %v68
    %140 = vmatprep.subr.mxu0 %v73
    %141 = vmatpush1.msra.mxu0 %v72
    %142 = vmatprep.subr.mxu0 %v77
    %143 = vmatpush1.msra.mxu0 %v76
    %144 = vmatprep.subr.mxu0 %v81
    %145 = vmatpush1.msra.mxu0 %v80
    %146 = vmatprep.subr.mxu0 %v85
    %147 = vmatpush1.msra.mxu0 %v84
    %148 = vmatprep.subr.mxu0 %v89
    %149 = vmatpush1.msra.mxu0 %v88
    %150 = vmatprep.subr.mxu0 %v93
    %151 = vmatpush1.msra.mxu0 %v92
    %152 = vmatprep.subr.mxu0 %v97
    %153 = vmatpush1.msra.mxu0 %v96
    %154 = vmatprep.subr.mxu0 0.0
    %155 = vmatpush1.msra.mxu0 0.0
    %156 = vmatprep.subr.mxu0 0.0
    %157 = vmatpush1.msra.mxu0 0.0
    %158 = vmatprep.subr.mxu0 0.0
    %159 = vmatpush1.msra.mxu0 0.0
    %160 = vmatprep.subr.mxu0 0.0
    %161 = vmatpush1.msra.mxu0 0.0
    %162 = vmatprep.subr.mxu0 0.0
    %163 = vmatpush1.msra.mxu0 0.0
    %164 = vmatprep.subr.mxu0 0.0
    %165 = vmatpush1.msra.mxu0 0.0
    %166 = vmatprep.subr.mxu0 0.0
    %167 = vmatpush1.msra.mxu0 0.0
    %168 = vmatprep.subr.mxu0 0.0
    %169 = vmatpush1.msra.mxu0 0.0
    %170 = vmatprep.subr.mxu0 0.0
    %171 = vmatpush1.msra.mxu0 0.0
    %172 = vmatprep.subr.mxu0 0.0
    %173 = vmatpush1.msra.mxu0 0.0
    %174 = vmatprep.subr.mxu0 0.0
    %175 = vmatpush1.msra.mxu0 0.0
    %176 = vmatprep.subr.mxu0 0.0
    %177 = vmatpush1.msra.mxu0 0.0
    %178 = vmatprep.subr.mxu0 0.0
    %179 = vmatpush1.msra.mxu0 0.0
    %180 = vmatprep.subr.mxu0 0.0
    %181 = vmatpush1.msra.mxu0 0.0
    %182 = vmatprep.subr.mxu0 0.0
    %183 = vmatpush1.msra.mxu0 0.0
    %184 = vmatprep.subr.mxu0 0.0
    %185 = vmatpush1.msra.mxu0 0.0
    %186 = vmatprep.mubr.f32.mxu0 0.0
    %187 = vmatmul.mubr.f32.gmra.mrb[0].mxu0 %v28
    %v188 = vpop.f32.mrb[0].mxu0
    %v189 = vadd.f32 %v105, %v188
    %v190 = vpop.f32.mrb[0].mxu0
    %v191 = vadd.f32 %v109, %v190
    %192 = vmatprep.mubr.f32.mxu0 0.0
    %193 = vmatmul.mubr.f32.gmra.mrb[0].mxu0 %v29
    %v194 = vpop.f32.mrb[0].mxu0
    %v195 = vadd.f32 %v105, %v194
    %v196 = vpop.f32.mrb[0].mxu0
    %v197 = vadd.f32 %v109, %v196
    %198 = vmatprep.mubr.f32.mxu0 0.0
    %199 = vmatmul.mubr.f32.gmra.mrb[0].mxu0 %v30
    %v200 = vpop.f32.mrb[0].mxu0
    %v201 = vadd.f32 %v105, %v200
    %v202 = vpop.f32.mrb[0].mxu0
    %v203 = vadd.f32 %v109, %v202
    %204 = vmatprep.mubr.f32.mxu0 0.0
    %205 = vmatmul.mubr.f32.gmra.mrb[0].mxu0 %v31
    %v206 = vpop.f32.mrb[0].mxu0
    %v207 = vadd.f32 %v105, %v206
    %v208 = vpop.f32.mrb[0].mxu0
    %v209 = vadd.f32 %v109, %v208
    %210 = vmatprep.mubr.f32.mxu0 0.0
    %211 = vmatmul.mubr.f32.gmra.mrb[0].mxu0 %v32
    %v212 = vpop.f32.mrb[0].mxu0
    %v213 = vadd.f32 %v105, %v212
    %v214 = vpop.f32.mrb[0].mxu0
    %v215 = vadd.f32 %v109, %v214
    %216 = vmatprep.mubr.f32.mxu0 0.0
    %217 = vmatmul.mubr.f32.gmra.mrb[0].mxu0 %v33
    %v218 = vpop.f32.mrb[0].mxu0
    %v219 = vadd.f32 %v105, %v218
    %v220 = vpop.f32.mrb[0].mxu0
    %v221 = vadd.f32 %v109, %v220
    %222 = vmatprep.mubr.f32.mxu0 0.0
    %223 = vmatmul.mubr.f32.gmra.mrb[0].mxu0 %v34
    %v224 = vpop.f32.mrb[0].mxu0
    %v225 = vadd.f32 %v105, %v224
    %v226 = vpop.f32.mrb[0].mxu0
    %v227 = vadd.f32 %v109, %v226
    %228 = vmatprep.mubr.f32.mxu0 0.0
    %229 = vmatmul.mubr.f32.gmra.mrb[0].mxu0 %v35
    %v230 = vpop.f32.mrb[0].mxu0
    %v231 = vadd.f32 %v105, %v230
    %v232 = vpop.f32.mrb[0].mxu0
    %v233 = vadd.f32 %v109, %v232
    %234 = vdwg.mxu0
    %235 = vmatprep.subr.mxu0 %v39
    %236 = vmatpush1.msra.mxu0 %v38
    %237 = vmatprep.subr.mxu0 %v43
    %238 = vmatpush1.msra.mxu0 %v42
    %239 = vmatprep.subr.mxu0 %v47
    %240 = vmatpush1.msra.mxu0 %v46
    %241 = vmatprep.subr.mxu0 %v51
    %242 = vmatpush1.msra.mxu0 %v50
    %243 = vmatprep.subr.mxu0 %v55
    %244 = vmatpush1.msra.mxu0 %v54
    %245 = vmatprep.subr.mxu0 %v59
    %246 = vmatpush1.msra.mxu0 %v58
    %247 = vmatprep.subr.mxu0 %v63
    %248 = vmatpush1.msra.mxu0 %v62
    %249 = vmatprep.subr.mxu0 %v67
    %250 = vmatpush1.msra.mxu0 %v66
    %251 = vmatprep.subr.mxu0 %v71
    %252 = vmatpush1.msra.mxu0 %v70
    %253 = vmatprep.subr.mxu0 %v75
    %254 = vmatpush1.msra.mxu0 %v74
    %255 = vmatprep.subr.mxu0 %v79
    %256 = vmatpush1.msra.mxu0 %v78
    %257 = vmatprep.subr.mxu0 %v83
    %258 = vmatpush1.msra.mxu0 %v82
    %259 = vmatprep.subr.mxu0 %v87
    %260 = vmatpush1.msra.mxu0 %v86
    %261 = vmatprep.subr.mxu0 %v91
    %262 = vmatpush1.msra.mxu0 %v90
    %263 = vmatprep.subr.mxu0 %v95
    %264 = vmatpush1.msra.mxu0 %v94
    %265 = vmatprep.subr.mxu0 %v99
    %266 = vmatpush1.msra.mxu0 %v98
    %267 = vmatprep.subr.mxu0 0.0
    %268 = vmatpush1.msra.mxu0 0.0
    %269 = vmatprep.subr.mxu0 0.0
    %270 = vmatpush1.msra.mxu0 0.0
    %271 = vmatprep.subr.mxu0 0.0
    %272 = vmatpush1.msra.mxu0 0.0
    %273 = vmatprep.subr.mxu0 0.0
    %274 = vmatpush1.msra.mxu0 0.0
    %275 = vmatprep.subr.mxu0 0.0
    %276 = vmatpush1.msra.mxu0 0.0
    %277 = vmatprep.subr.mxu0 0.0
    %278 = vmatpush1.msra.mxu0 0.0
    %279 = vmatprep.subr.mxu0 0.0
    %280 = vmatpush1.msra.mxu0 0.0
    %281 = vmatprep.subr.mxu0 0.0
    %282 = vmatpush1.msra.mxu0 0.0
    %283 = vmatprep.subr.mxu0 0.0
    %284 = vmatpush1.msra.mxu0 0.0
    %285 = vmatprep.subr.mxu0 0.0
    %286 = vmatpush1.msra.mxu0 0.0
    %287 = vmatprep.subr.mxu0 0.0
    %288 = vmatpush1.msra.mxu0 0.0
    %289 = vmatprep.subr.mxu0 0.0
    %290 = vmatpush1.msra.mxu0 0.0
    %291 = vmatprep.subr.mxu0 0.0
    %292 = vmatpush1.msra.mxu0 0.0
    %293 = vmatprep.subr.mxu0 0.0
    %294 = vmatpush1.msra.mxu0 0.0
    %295 = vmatprep.subr.mxu0 0.0
    %296 = vmatpush1.msra.mxu0 0.0
    %297 = vmatprep.subr.mxu0 0.0
    %298 = vmatpush1.msra.mxu0 0.0
    %299 = vmatprep.mubr.f32.mxu0 0.0
    %300 = vmatmul.mubr.f32.gmra.mrb[0].mxu0 %v28
    %v301 = vpop.f32.mrb[0].mxu0
    %v302 = vadd.f32 %v113, %v301
    %v303 = vpop.f32.mrb[0].mxu0
    %v304 = vadd.f32 %v117, %v303
    %305 = vmatprep.mubr.f32.mxu0 0.0
    %306 = vmatmul.mubr.f32.gmra.mrb[0].mxu0 %v29
    %v307 = vpop.f32.mrb[0].mxu0
    %v308 = vadd.f32 %v113, %v307
    %v309 = vpop.f32.mrb[0].mxu0
    %v310 = vadd.f32 %v117, %v309
    %311 = vmatprep.mubr.f32.mxu0 0.0
    %312 = vmatmul.mubr.f32.gmra.mrb[0].mxu0 %v30
    %v313 = vpop.f32.mrb[0].mxu0
    %v314 = vadd.f32 %v113, %v313
    %v315 = vpop.f32.mrb[0].mxu0
    %v316 = vadd.f32 %v117, %v315
    %317 = vmatprep.mubr.f32.mxu0 0.0
    %318 = vmatmul.mubr.f32.gmra.mrb[0].mxu0 %v31
    %v319 = vpop.f32.mrb[0].mxu0
    %v320 = vadd.f32 %v113, %v319
    %v321 = vpop.f32.mrb[0].mxu0
    %v322 = vadd.f32 %v117, %v321
    %323 = vmatprep.mubr.f32.mxu0 0.0
    %324 = vmatmul.mubr.f32.gmra.mrb[0].mxu0 %v32
    %v325 = vpop.f32.mrb[0].mxu0
    %v326 = vadd.f32 %v113, %v325
    %v327 = vpop.f32.mrb[0].mxu0
    %v328 = vadd.f32 %v117, %v327
    %329 = vmatprep.mubr.f32.mxu0 0.0
    %330 = vmatmul.mubr.f32.gmra.mrb[0].mxu0 %v33
    %v331 = vpop.f32.mrb[0].mxu0
    %v332 = vadd.f32 %v113, %v331
    %v333 = vpop.f32.mrb[0].mxu0
    %v334 = vadd.f32 %v117, %v333
    %335 = vmatprep.mubr.f32.mxu0 0.0
    %336 = vmatmul.mubr.f32.gmra.mrb[0].mxu0 %v34
    %v337 = vpop.f32.mrb[0].mxu0
    %v338 = vadd.f32 %v113, %v337
    %v339 = vpop.f32.mrb[0].mxu0
    %v340 = vadd.f32 %v117, %v339
    %341 = vmatprep.mubr.f32.mxu0 0.0
    %342 = vmatmul.mubr.f32.gmra.mrb[0].mxu0 %v35
    %v343 = vpop.f32.mrb[0].mxu0
    %v344 = vadd.f32 %v113, %v343
    %v345 = vpop.f32.mrb[0].mxu0
    %v346 = vadd.f32 %v117, %v345
    %347 = vdwg.mxu0
    %348 = vst [vmem:[#allocation2] sm:$0xff] %v189
    %349 = vst [vmem:[#allocation2 + $0x8] sm:$0xff] %v191
    %350 = vst [vmem:[#allocation2 + $0x10] sm:$0xff] %v302
    %351 = vst [vmem:[#allocation2 + $0x18] sm:$0xff] %v304
    %352 = vst [vmem:[#allocation2 + $0x20] sm:$0xff] %v195
    %353 = vst [vmem:[#allocation2 + $0x28] sm:$0xff] %v197
    %354 = vst [vmem:[#allocation2 + $0x30] sm:$0xff] %v308
    %355 = vst [vmem:[#allocation2 + $0x38] sm:$0xff] %v310
    %356 = vst [vmem:[#allocation2 + $0x40] sm:$0xff] %v201
    %357 = vst [vmem:[#allocation2 + $0x48] sm:$0xff] %v203
    %358 = vst [vmem:[#allocation2 + $0x50] sm:$0xff] %v314
    %359 = vst [vmem:[#allocation2 + $0x58] sm:$0xff] %v316
    %360 = vst [vmem:[#allocation2 + $0x60] sm:$0xff] %v207
    %361 = vst [vmem:[#allocation2 + $0x68] sm:$0xff] %v209
    %362 = vst [vmem:[#allocation2 + $0x70] sm:$0xff] %v320
    %363 = vst [vmem:[#allocation2 + $0x78] sm:$0xff] %v322
    %364 = vst [vmem:[#allocation2 + $0x80] sm:$0xff] %v213
    %365 = vst [vmem:[#allocation2 + $0x88] sm:$0xff] %v215
    %366 = vst [vmem:[#allocation2 + $0x90] sm:$0xff] %v326
    %367 = vst [vmem:[#allocation2 + $0x98] sm:$0xff] %v328
    %368 = vst [vmem:[#allocation2 + $0xa0] sm:$0xff] %v219
    %369 = vst [vmem:[#allocation2 + $0xa8] sm:$0xff] %v221
    %370 = vst [vmem:[#allocation2 + $0xb0] sm:$0xff] %v332
    %371 = vst [vmem:[#allocation2 + $0xb8] sm:$0xff] %v334
    %372 = vst [vmem:[#allocation2 + $0xc0] sm:$0xff] %v225
    %373 = vst [vmem:[#allocation2 + $0xc8] sm:$0xff] %v227
    %374 = vst [vmem:[#allocation2 + $0xd0] sm:$0xff] %v338
    %375 = vst [vmem:[#allocation2 + $0xd8] sm:$0xff] %v340
    %376 = vst [vmem:[#allocation2 + $0xe0] sm:$0xff] %v231
    %377 = vst [vmem:[#allocation2 + $0xe8] sm:$0xff] %v233
    %378 = vst [vmem:[#allocation2 + $0xf0] sm:$0xff] %v344
    %379 = vst [vmem:[#allocation2 + $0xf8] sm:$0xff] %v346
    %v380 = vld [vmem:[%s4] sm:$0xff]
    %v381 = vld [vmem:[%s5] sm:$0xff]
    %v382 = vld [vmem:[#allocation2] sm:$0xff]
    %v383 = vld [vmem:[#allocation2 + $0x8] sm:$0xff]
    %v384 = vld [vmem:[#allocation2 + $0x10] sm:$0xff]
    %v385 = vld [vmem:[#allocation2 + $0x18] sm:$0xff]
    %v386 = vld [vmem:[%s2] sm:$0xff]
    %v387 = vld [vmem:[%s2 + $0x8] sm:$0xff]
    %v388 = vld [vmem:[%s2 + $0x10] sm:$0xff]
    %v389 = vld [vmem:[%s2 + $0x18] sm:$0xff]
    %v390 = vld [vmem:[%s2 + $0x20] sm:$0xff]
    %v391 = vld [vmem:[%s2 + $0x28] sm:$0xff]
    %v392 = vld [vmem:[%s2 + $0x30] sm:$0xff]
    %v393 = vld [vmem:[%s2 + $0x38] sm:$0xff]
    %v394 = vld [vmem:[%s2 + $0x40] sm:$0xff]
    %v395 = vld [vmem:[%s2 + $0x48] sm:$0xff]
    %v396 = vld [vmem:[%s2 + $0x50] sm:$0xff]
    %v397 = vld [vmem:[%s2 + $0x58] sm:$0xff]
    %v398 = vld [vmem:[%s2 + $0x60] sm:$0xff]
    %v399 = vld [vmem:[%s2 + $0x68] sm:$0xff]
    %v400 = vld [vmem:[%s2 + $0x70] sm:$0xff]
    %v401 = vld [vmem:[%s2 + $0x78] sm:$0xff]
    %v402 = vld [vmem:[%s2 + $0x80] sm:$0xff]
    %v403 = vld [vmem:[%s2 + $0x88] sm:$0xff]
    %v404 = vld [vmem:[%s2 + $0x90] sm:$0xff]
    %v405 = vld [vmem:[%s2 + $0x98] sm:$0xff]
    %v406 = vld [vmem:[%s2 + $0xa0] sm:$0xff]
    %v407 = vld [vmem:[%s2 + $0xa8] sm:$0xff]
    %v408 = vld [vmem:[%s2 + $0xb0] sm:$0xff]
    %v409 = vld [vmem:[%s2 + $0xb8] sm:$0xff]
    %v410 = vld [vmem:[%s2 + $0xc0] sm:$0xff]
    %v411 = vld [vmem:[%s2 + $0xc8] sm:$0xff]
    %v412 = vld [vmem:[%s2 + $0xd0] sm:$0xff]
    %v413 = vld [vmem:[%s2 + $0xd8] sm:$0xff]
    %v414 = vld [vmem:[%s2 + $0xe0] sm:$0xff]
    %v415 = vld [vmem:[%s2 + $0xe8] sm:$0xff]
    %v416 = vld [vmem:[%s2 + $0xf0] sm:$0xff]
    %v417 = vld [vmem:[%s2 + $0xf8] sm:$0xff]
    %v418 = vld [vmem:[%s2 + $0x100] sm:$0xff]
    %v419 = vld [vmem:[%s2 + $0x108] sm:$0xff]
    %v420 = vld [vmem:[%s2 + $0x110] sm:$0xff]
    %v421 = vld [vmem:[%s2 + $0x118] sm:$0xff]
    %v422 = vld [vmem:[%s2 + $0x120] sm:$0xff]
    %v423 = vld [vmem:[%s2 + $0x128] sm:$0xff]
    %v424 = vld [vmem:[%s2 + $0x130] sm:$0xff]
    %v425 = vld [vmem:[%s2 + $0x138] sm:$0xff]
    %v426 = vld [vmem:[%s2 + $0x140] sm:$0xff]
    %v427 = vld [vmem:[%s2 + $0x148] sm:$0xff]
    %v428 = vld [vmem:[%s2 + $0x150] sm:$0xff]
    %v429 = vld [vmem:[%s2 + $0x158] sm:$0xff]
    %v430 = vld [vmem:[%s2 + $0x160] sm:$0xff]
    %v431 = vld [vmem:[%s2 + $0x168] sm:$0xff]
    %v432 = vld [vmem:[%s2 + $0x170] sm:$0xff]
    %v433 = vld [vmem:[%s2 + $0x178] sm:$0xff]
    %v434 = vld [vmem:[%s2 + $0x180] sm:$0xff]
    %v435 = vld [vmem:[%s2 + $0x188] sm:$0xff]
    %v436 = vld [vmem:[%s2 + $0x190] sm:$0xff]
    %v437 = vld [vmem:[%s2 + $0x198] sm:$0xff]
    %v438 = vld [vmem:[%s2 + $0x1a0] sm:$0xff]
    %v439 = vld [vmem:[%s2 + $0x1a8] sm:$0xff]
    %v440 = vld [vmem:[%s2 + $0x1b0] sm:$0xff]
    %v441 = vld [vmem:[%s2 + $0x1b8] sm:$0xff]
    %v442 = vld [vmem:[%s2 + $0x1c0] sm:$0xff]
    %v443 = vld [vmem:[%s2 + $0x1c8] sm:$0xff]
    %v444 = vld [vmem:[%s2 + $0x1d0] sm:$0xff]
    %v445 = vld [vmem:[%s2 + $0x1d8] sm:$0xff]
    %v446 = vld [vmem:[%s2 + $0x1e0] sm:$0xff]
    %v447 = vld [vmem:[%s2 + $0x1e8] sm:$0xff]
    %v448 = vld [vmem:[%s2 + $0x1f0] sm:$0xff]
    %v449 = vld [vmem:[%s2 + $0x1f8] sm:$0xff]
    %450 = vmatprep.subr.mxu0 %v387
    %451 = vmatpush1.msra.mxu0 %v386
    %452 = vmatprep.subr.mxu0 %v391
    %453 = vmatpush1.msra.mxu0 %v390
    %454 = vmatprep.subr.mxu0 %v395
    %455 = vmatpush1.msra.mxu0 %v394
    %456 = vmatprep.subr.mxu0 %v399
    %457 = vmatpush1.msra.mxu0 %v398
    %458 = vmatprep.subr.mxu0 %v403
    %459 = vmatpush1.msra.mxu0 %v402
    %460 = vmatprep.subr.mxu0 %v407
    %461 = vmatpush1.msra.mxu0 %v406
    %462 = vmatprep.subr.mxu0 %v411
    %463 = vmatpush1.msra.mxu0 %v410
    %464 = vmatprep.subr.mxu0 %v415
    %465 = vmatpush1.msra.mxu0 %v414
    %466 = vmatprep.subr.mxu0 %v419
    %467 = vmatpush1.msra.mxu0 %v418
    %468 = vmatprep.subr.mxu0 %v423
    %469 = vmatpush1.msra.mxu0 %v422
    %470 = vmatprep.subr.mxu0 %v427
    %471 = vmatpush1.msra.mxu0 %v426
    %472 = vmatprep.subr.mxu0 %v431
    %473 = vmatpush1.msra.mxu0 %v430
    %474 = vmatprep.subr.mxu0 %v435
    %475 = vmatpush1.msra.mxu0 %v434
    %476 = vmatprep.subr.mxu0 %v439
    %477 = vmatpush1.msra.mxu0 %v438
    %478 = vmatprep.subr.mxu0 %v443
    %479 = vmatpush1.msra.mxu0 %v442
    %480 = vmatprep.subr.mxu0 %v447
    %481 = vmatpush1.msra.mxu0 %v446
    %482 = vmatprep.subr.mxu0 0.0
    %483 = vmatpush1.msra.mxu0 0.0
    %484 = vmatprep.subr.mxu0 0.0
    %485 = vmatpush1.msra.mxu0 0.0
    %486 = vmatprep.subr.mxu0 0.0
    %487 = vmatpush1.msra.mxu0 0.0
    %488 = vmatprep.subr.mxu0 0.0
    %489 = vmatpush1.msra.mxu0 0.0
    %490 = vmatprep.subr.mxu0 0.0
    %491 = vmatpush1.msra.mxu0 0.0
    %492 = vmatprep.subr.mxu0 0.0
    %493 = vmatpush1.msra.mxu0 0.0
    %494 = vmatprep.subr.mxu0 0.0
    %495 = vmatpush1.msra.mxu0 0.0
    %496 = vmatprep.subr.mxu0 0.0
    %497 = vmatpush1.msra.mxu0 0.0
    %498 = vmatprep.subr.mxu0 0.0
    %499 = vmatpush1.msra.mxu0 0.0
    %500 = vmatprep.subr.mxu0 0.0
    %501 = vmatpush1.msra.mxu0 0.0
    %502 = vmatprep.subr.mxu0 0.0
    %503 = vmatpush1.msra.mxu0 0.0
    %504 = vmatprep.subr.mxu0 0.0
    %505 = vmatpush1.msra.mxu0 0.0
    %506 = vmatprep.subr.mxu0 0.0
    %507 = vmatpush1.msra.mxu0 0.0
    %508 = vmatprep.subr.mxu0 0.0
    %509 = vmatpush1.msra.mxu0 0.0
    %510 = vmatprep.subr.mxu0 0.0
    %511 = vmatpush1.msra.mxu0 0.0
    %512 = vmatprep.subr.mxu0 0.0
    %513 = vmatpush1.msra.mxu0 0.0
    %514 = vmatprep.mubr.f32.mxu0 0.0
    %515 = vmatmul.mubr.f32.gmra.mrb[0].mxu0 %v380
    %v516 = vpop.f32.mrb[0].mxu0
    %v517 = vadd.f32 0.0, %v516
    %v518 = vpop.f32.mrb[0].mxu0
    %v519 = vadd.f32 0.0, %v518
    %520 = vdwg.mxu0
    %521 = vmatprep.subr.mxu0 %v389
    %522 = vmatpush1.msra.mxu0 %v388
    %523 = vmatprep.subr.mxu0 %v393
    %524 = vmatpush1.msra.mxu0 %v392
    %525 = vmatprep.subr.mxu0 %v397
    %526 = vmatpush1.msra.mxu0 %v396
    %527 = vmatprep.subr.mxu0 %v401
    %528 = vmatpush1.msra.mxu0 %v400
    %529 = vmatprep.subr.mxu0 %v405
    %530 = vmatpush1.msra.mxu0 %v404
    %531 = vmatprep.subr.mxu0 %v409
    %532 = vmatpush1.msra.mxu0 %v408
    %533 = vmatprep.subr.mxu0 %v413
    %534 = vmatpush1.msra.mxu0 %v412
    %535 = vmatprep.subr.mxu0 %v417
    %536 = vmatpush1.msra.mxu0 %v416
    %537 = vmatprep.subr.mxu0 %v421
    %538 = vmatpush1.msra.mxu0 %v420
    %539 = vmatprep.subr.mxu0 %v425
    %540 = vmatpush1.msra.mxu0 %v424
    %541 = vmatprep.subr.mxu0 %v429
    %542 = vmatpush1.msra.mxu0 %v428
    %543 = vmatprep.subr.mxu0 %v433
    %544 = vmatpush1.msra.mxu0 %v432
    %545 = vmatprep.subr.mxu0 %v437
    %546 = vmatpush1.msra.mxu0 %v436
    %547 = vmatprep.subr.mxu0 %v441
    %548 = vmatpush1.msra.mxu0 %v440
    %549 = vmatprep.subr.mxu0 %v445
    %550 = vmatpush1.msra.mxu0 %v444
    %551 = vmatprep.subr.mxu0 %v449
    %552 = vmatpush1.msra.mxu0 %v448
    %553 = vmatprep.subr.mxu0 0.0
    %554 = vmatpush1.msra.mxu0 0.0
    %555 = vmatprep.subr.mxu0 0.0
    %556 = vmatpush1.msra.mxu0 0.0
    %557 = vmatprep.subr.mxu0 0.0
    %558 = vmatpush1.msra.mxu0 0.0
    %559 = vmatprep.subr.mxu0 0.0
    %560 = vmatpush1.msra.mxu0 0.0
    %561 = vmatprep.subr.mxu0 0.0
    %562 = vmatpush1.msra.mxu0 0.0
    %563 = vmatprep.subr.mxu0 0.0
    %564 = vmatpush1.msra.mxu0 0.0
    %565 = vmatprep.subr.mxu0 0.0
    %566 = vmatpush1.msra.mxu0 0.0
    %567 = vmatprep.subr.mxu0 0.0
    %568 = vmatpush1.msra.mxu0 0.0
    %569 = vmatprep.subr.mxu0 0.0
    %570 = vmatpush1.msra.mxu0 0.0
    %571 = vmatprep.subr.mxu0 0.0
    %572 = vmatpush1.msra.mxu0 0.0
    %573 = vmatprep.subr.mxu0 0.0
    %574 = vmatpush1.msra.mxu0 0.0
    %575 = vmatprep.subr.mxu0 0.0
    %576 = vmatpush1.msra.mxu0 0.0
    %577 = vmatprep.subr.mxu0 0.0
    %578 = vmatpush1.msra.mxu0 0.0
    %579 = vmatprep.subr.mxu0 0.0
    %580 = vmatpush1.msra.mxu0 0.0
    %581 = vmatprep.subr.mxu0 0.0
    %582 = vmatpush1.msra.mxu0 0.0
    %583 = vmatprep.subr.mxu0 0.0
    %584 = vmatpush1.msra.mxu0 0.0
    %585 = vmatprep.mubr.f32.mxu0 0.0
    %586 = vmatmul.mubr.f32.gmra.mrb[0].mxu0 %v380
    %v587 = vpop.f32.mrb[0].mxu0
    %v588 = vadd.f32 0.0, %v587
    %v589 = vpop.f32.mrb[0].mxu0
    %v590 = vadd.f32 0.0, %v589
    %591 = vdwg.mxu0
    %v592 = vadd.f32 %v382, %v517
    %v593 = vadd.f32 %v383, %v519
    %v594 = vadd.f32 %v384, %v588
    %v595 = vadd.f32 %v385, %v590
    %v596 = vxor.u32 %v592, 2147483648
    %v597 = vxor.u32 %v593, 2147483648
    %v598 = vxor.u32 %v594, 2147483648
    %v599 = vmul.f32 %v596, 1.442695
    %v600 = vpow.pop %v599
    %v601 = vmul.f32 %v597, 1.442695
    %v602 = vpow.pop %v601
    %v603 = vmul.f32 %v598, 1.442695
    %v604 = vpow.pop %v603
    %v605 = vadd.f32 %v600, 1.0
    %v606 = vadd.f32 %v602, 1.0
    %v607 = vadd.f32 %v604, 1.0
    %v608 = vrcp.pop %v605
    %v609 = vmul.f32 1.0, %v608
    %v610 = vrcp.pop %v606
    %v611 = vmul.f32 1.0, %v610
    %v612 = vrcp.pop %v607
    %v613 = vmul.f32 1.0, %v612
    %v614 = vtanh.pop %v595
    %v615 = vmul.f32 %v611, %v381
    %v616 = vmul.f32 %v609, %v614
    %v617 = vadd.f32 %v615, %v616
    %v618 = vtanh.pop %v617
    %v619 = vmul.f32 %v613, %v618
    %620 = vst [vmem:[%s6] sm:$0xff] %v619
    %s621 = scalar_lea.vmem [#allocation2], 32
    %v622 = vld [vmem:[%s621] sm:$0xff]
    %v623 = vld [vmem:[%s621 + $0x8] sm:$0xff]
    %v624 = vld [vmem:[%s621 + $0x10] sm:$0xff]
    %v625 = vld [vmem:[%s621 + $0x18] sm:$0xff]
    %v626 = vld [vmem:[%s2] sm:$0xff]
    %v627 = vld [vmem:[%s2 + $0x8] sm:$0xff]
    %v628 = vld [vmem:[%s2 + $0x10] sm:$0xff]
    %v629 = vld [vmem:[%s2 + $0x18] sm:$0xff]
    %v630 = vld [vmem:[%s2 + $0x20] sm:$0xff]
    %v631 = vld [vmem:[%s2 + $0x28] sm:$0xff]
    %v632 = vld [vmem:[%s2 + $0x30] sm:$0xff]
    %v633 = vld [vmem:[%s2 + $0x38] sm:$0xff]
    %v634 = vld [vmem:[%s2 + $0x40] sm:$0xff]
    %v635 = vld [vmem:[%s2 + $0x48] sm:$0xff]
    %v636 = vld [vmem:[%s2 + $0x50] sm:$0xff]
    %v637 = vld [vmem:[%s2 + $0x58] sm:$0xff]
    %v638 = vld [vmem:[%s2 + $0x60] sm:$0xff]
    %v639 = vld [vmem:[%s2 + $0x68] sm:$0xff]
    %v640 = vld [vmem:[%s2 + $0x70] sm:$0xff]
    %v641 = vld [vmem:[%s2 + $0x78] sm:$0xff]
    %v642 = vld [vmem:[%s2 + $0x80] sm:$0xff]
    %v643 = vld [vmem:[%s2 + $0x88] sm:$0xff]
    %v644 = vld [vmem:[%s2 + $0x90] sm:$0xff]
    %v645 = vld [vmem:[%s2 + $0x98] sm:$0xff]
    %v646 = vld [vmem:[%s2 + $0xa0] sm:$0xff]
    %v647 = vld [vmem:[%s2 + $0xa8] sm:$0xff]
    %v648 = vld [vmem:[%s2 + $0xb0] sm:$0xff]
    %v649 = vld [vmem:[%s2 + $0xb8] sm:$0xff]
    %v650 = vld [vmem:[%s2 + $0xc0] sm:$0xff]
    %v651 = vld [vmem:[%s2 + $0xc8] sm:$0xff]
    %v652 = vld [vmem:[%s2 + $0xd0] sm:$0xff]
    %v653 = vld [vmem:[%s2 + $0xd8] sm:$0xff]
    %v654 = vld [vmem:[%s2 + $0xe0] sm:$0xff]
    %v655 = vld [vmem:[%s2 + $0xe8] sm:$0xff]
    %v656 = vld [vmem:[%s2 + $0xf0] sm:$0xff]
    %v657 = vld [vmem:[%s2 + $0xf8] sm:$0xff]
    %v658 = vld [vmem:[%s2 + $0x100] sm:$0xff]
    %v659 = vld [vmem:[%s2 + $0x108] sm:$0xff]
    %v660 = vld [vmem:[%s2 + $0x110] sm:$0xff]
    %v661 = vld [vmem:[%s2 + $0x118] sm:$0xff]
    %v662 = vld [vmem:[%s2 + $0x120] sm:$0xff]
    %v663 = vld [vmem:[%s2 + $0x128] sm:$0xff]
    %v664 = vld [vmem:[%s2 + $0x130] sm:$0xff]
    %v665 = vld [vmem:[%s2 + $0x138] sm:$0xff]
    %v666 = vld [vmem:[%s2 + $0x140] sm:$0xff]
    %v667 = vld [vmem:[%s2 + $0x148] sm:$0xff]
    %v668 = vld [vmem:[%s2 + $0x150] sm:$0xff]
    %v669 = vld [vmem:[%s2 + $0x158] sm:$0xff]
    %v670 = vld [vmem:[%s2 + $0x160] sm:$0xff]
    %v671 = vld [vmem:[%s2 + $0x168] sm:$0xff]
    %v672 = vld [vmem:[%s2 + $0x170] sm:$0xff]
    %v673 = vld [vmem:[%s2 + $0x178] sm:$0xff]
    %v674 = vld [vmem:[%s2 + $0x180] sm:$0xff]
    %v675 = vld [vmem:[%s2 + $0x188] sm:$0xff]
    %v676 = vld [vmem:[%s2 + $0x190] sm:$0xff]
    %v677 = vld [vmem:[%s2 + $0x198] sm:$0xff]
    %v678 = vld [vmem:[%s2 + $0x1a0] sm:$0xff]
    %v679 = vld [vmem:[%s2 + $0x1a8] sm:$0xff]
    %v680 = vld [vmem:[%s2 + $0x1b0] sm:$0xff]
    %v681 = vld [vmem:[%s2 + $0x1b8] sm:$0xff]
    %v682 = vld [vmem:[%s2 + $0x1c0] sm:$0xff]
    %v683 = vld [vmem:[%s2 + $0x1c8] sm:$0xff]
    %v684 = vld [vmem:[%s2 + $0x1d0] sm:$0xff]
    %v685 = vld [vmem:[%s2 + $0x1d8] sm:$0xff]
    %v686 = vld [vmem:[%s2 + $0x1e0] sm:$0xff]
    %v687 = vld [vmem:[%s2 + $0x1e8] sm:$0xff]
    %v688 = vld [vmem:[%s2 + $0x1f0] sm:$0xff]
    %v689 = vld [vmem:[%s2 + $0x1f8] sm:$0xff]
    %690 = vmatprep.subr.mxu0 %v627
    %691 = vmatpush1.msra.mxu0 %v626
    %692 = vmatprep.subr.mxu0 %v631
    %693 = vmatpush1.msra.mxu0 %v630
    %694 = vmatprep.subr.mxu0 %v635
    %695 = vmatpush1.msra.mxu0 %v634
    %696 = vmatprep.subr.mxu0 %v639
    %697 = vmatpush1.msra.mxu0 %v638
    %698 = vmatprep.subr.mxu0 %v643
    %699 = vmatpush1.msra.mxu0 %v642
    %700 = vmatprep.subr.mxu0 %v647
    %701 = vmatpush1.msra.mxu0 %v646
    %702 = vmatprep.subr.mxu0 %v651
    %703 = vmatpush1.msra.mxu0 %v650
    %704 = vmatprep.subr.mxu0 %v655
    %705 = vmatpush1.msra.mxu0 %v654
    %706 = vmatprep.subr.mxu0 %v659
    %707 = vmatpush1.msra.mxu0 %v658
    %708 = vmatprep.subr.mxu0 %v663
    %709 = vmatpush1.msra.mxu0 %v662
    %710 = vmatprep.subr.mxu0 %v667
    %711 = vmatpush1.msra.mxu0 %v666
    %712 = vmatprep.subr.mxu0 %v671
    %713 = vmatpush1.msra.mxu0 %v670
    %714 = vmatprep.subr.mxu0 %v675
    %715 = vmatpush1.msra.mxu0 %v674
    %716 = vmatprep.subr.mxu0 %v679
    %717 = vmatpush1.msra.mxu0 %v678
    %718 = vmatprep.subr.mxu0 %v683
    %719 = vmatpush1.msra.mxu0 %v682
    %720 = vmatprep.subr.mxu0 %v687
    %721 = vmatpush1.msra.mxu0 %v686
    %722 = vmatprep.subr.mxu0 0.0
    %723 = vmatpush1.msra.mxu0 0.0
    %724 = vmatprep.subr.mxu0 0.0
    %725 = vmatpush1.msra.mxu0 0.0
    %726 = vmatprep.subr.mxu0 0.0
    %727 = vmatpush1.msra.mxu0 0.0
    %728 = vmatprep.subr.mxu0 0.0
    %729 = vmatpush1.msra.mxu0 0.0
    %730 = vmatprep.subr.mxu0 0.0
    %731 = vmatpush1.msra.mxu0 0.0
    %732 = vmatprep.subr.mxu0 0.0
    %733 = vmatpush1.msra.mxu0 0.0
    %734 = vmatprep.subr.mxu0 0.0
    %735 = vmatpush1.msra.mxu0 0.0
    %736 = vmatprep.subr.mxu0 0.0
    %737 = vmatpush1.msra.mxu0 0.0
    %738 = vmatprep.subr.mxu0 0.0
    %739 = vmatpush1.msra.mxu0 0.0
    %740 = vmatprep.subr.mxu0 0.0
    %741 = vmatpush1.msra.mxu0 0.0
    %742 = vmatprep.subr.mxu0 0.0
    %743 = vmatpush1.msra.mxu0 0.0
    %744 = vmatprep.subr.mxu0 0.0
    %745 = vmatpush1.msra.mxu0 0.0
    %746 = vmatprep.subr.mxu0 0.0
    %747 = vmatpush1.msra.mxu0 0.0
    %748 = vmatprep.subr.mxu0 0.0
    %749 = vmatpush1.msra.mxu0 0.0
    %750 = vmatprep.subr.mxu0 0.0
    %751 = vmatpush1.msra.mxu0 0.0
    %752 = vmatprep.subr.mxu0 0.0
    %753 = vmatpush1.msra.mxu0 0.0
    %754 = vmatprep.mubr.f32.mxu0 0.0
    %755 = vmatmul.mubr.f32.gmra.mrb[0].mxu0 %v619
    %v756 = vpop.f32.mrb[0].mxu0
    %v757 = vadd.f32 0.0, %v756
    %v758 = vpop.f32.mrb[0].mxu0
    %v759 = vadd.f32 0.0, %v758
    %760 = vdwg.mxu0
    %761 = vmatprep.subr.mxu0 %v629
    %762 = vmatpush1.msra.mxu0 %v628
    %763 = vmatprep.subr.mxu0 %v633
    %764 = vmatpush1.msra.mxu0 %v632
    %765 = vmatprep.subr.mxu0 %v637
    %766 = vmatpush1.msra.mxu0 %v636
    %767 = vmatprep.subr.mxu0 %v641
    %768 = vmatpush1.msra.mxu0 %v640
    %769 = vmatprep.subr.mxu0 %v645
    %770 = vmatpush1.msra.mxu0 %v644
    %771 = vmatprep.subr.mxu0 %v649
    %772 = vmatpush1.msra.mxu0 %v648
    %773 = vmatprep.subr.mxu0 %v653
    %774 = vmatpush1.msra.mxu0 %v652
    %775 = vmatprep.subr.mxu0 %v657
    %776 = vmatpush1.msra.mxu0 %v656
    %777 = vmatprep.subr.mxu0 %v661
    %778 = vmatpush1.msra.mxu0 %v660
    %779 = vmatprep.subr.mxu0 %v665
    %780 = vmatpush1.msra.mxu0 %v664
    %781 = vmatprep.subr.mxu0 %v669
    %782 = vmatpush1.msra.mxu0 %v668
    %783 = vmatprep.subr.mxu0 %v673
    %784 = vmatpush1.msra.mxu0 %v672
    %785 = vmatprep.subr.mxu0 %v677
    %786 = vmatpush1.msra.mxu0 %v676
    %787 = vmatprep.subr.mxu0 %v681
    %788 = vmatpush1.msra.mxu0 %v680
    %789 = vmatprep.subr.mxu0 %v685
    %790 = vmatpush1.msra.mxu0 %v684
    %791 = vmatprep.subr.mxu0 %v689
    %792 = vmatpush1.msra.mxu0 %v688
    %793 = vmatprep.subr.mxu0 0.0
    %794 = vmatpush1.msra.mxu0 0.0
    %795 = vmatprep.subr.mxu0 0.0
    %796 = vmatpush1.msra.mxu0 0.0
    %797 = vmatprep.subr.mxu0 0.0
    %798 = vmatpush1.msra.mxu0 0.0
    %799 = vmatprep.subr.mxu0 0.0
    %800 = vmatpush1.msra.mxu0 0.0
    %801 = vmatprep.subr.mxu0 0.0
    %802 = vmatpush1.msra.mxu0 0.0
    %803 = vmatprep.subr.mxu0 0.0
    %804 = vmatpush1.msra.mxu0 0.0
    %805 = vmatprep.subr.mxu0 0.0
    %806 = vmatpush1.msra.mxu0 0.0
    %807 = vmatprep.subr.mxu0 0.0
    %808 = vmatpush1.msra.mxu0 0.0
    %809 = vmatprep.subr.mxu0 0.0
    %810 = vmatpush1.msra.mxu0 0.0
    %811 = vmatprep.subr.mxu0 0.0
    %812 = vmatpush1.msra.mxu0 0.0
    %813 = vmatprep.subr.mxu0 0.0
    %814 = vmatpush1.msra.mxu0 0.0
    %815 = vmatprep.subr.mxu0 0.0
    %816 = vmatpush1.msra.mxu0 0.0
    %817 = vmatprep.subr.mxu0 0.0
    %818 = vmatpush1.msra.mxu0 0.0
    %819 = vmatprep.subr.mxu0 0.0
    %820 = vmatpush1.msra.mxu0 0.0
    %821 = vmatprep.subr.mxu0 0.0
    %822 = vmatpush1.msra.mxu0 0.0
    %823 = vmatprep.subr.mxu0 0.0
    %824 = vmatpush1.msra.mxu0 0.0
    %825 = vmatprep.mubr.f32.mxu0 0.0
    %826 = vmatmul.mubr.f32.gmra.mrb[0].mxu0 %v619
    %v827 = vpop.f32.mrb[0].mxu0
    %v828 = vadd.f32 0.0, %v827
    %v829 = vpop.f32.mrb[0].mxu0
    %v830 = vadd.f32 0.0, %v829
    %831 = vdwg.mxu0
    %v832 = vadd.f32 %v622, %v757
    %v833 = vadd.f32 %v623, %v759
    %v834 = vadd.f32 %v624, %v828
    %v835 = vadd.f32 %v625, %v830
    %v836 = vxor.u32 %v832, 2147483648
    %v837 = vxor.u32 %v833, 2147483648
    %v838 = vxor.u32 %v834, 2147483648
    %v839 = vmul.f32 %v836, 1.442695
    %v840 = vpow.pop %v839
    %v841 = vmul.f32 %v837, 1.442695
    %v842 = vpow.pop %v841
    %v843 = vmul.f32 %v838, 1.442695
    %v844 = vpow.pop %v843
    %v845 = vadd.f32 %v840, 1.0
    %v846 = vadd.f32 %v842, 1.0
    %v847 = vadd.f32 %v844, 1.0
    %v848 = vrcp.pop %v845
    %v849 = vmul.f32 1.0, %v848
    %v850 = vrcp.pop %v846
    %v851 = vmul.f32 1.0, %v850
    %v852 = vrcp.pop %v847
    %v853 = vmul.f32 1.0, %v852
    %v854 = vtanh.pop %v835
    %v855 = vmul.f32 %v851, %v617
    %v856 = vmul.f32 %v849, %v854
    %v857 = vadd.f32 %v855, %v856
    %v858 = vtanh.pop %v857
    %v859 = vmul.f32 %v853, %v858
    %s860 = scalar_lea.vmem %s6, 8
    %861 = vst [vmem:[%s860] sm:$0xff] %v859
    %s862 = scalar_lea.vmem [#allocation2], 64
    %v863 = vld [vmem:[%s862] sm:$0xff]
    %v864 = vld [vmem:[%s862 + $0x8] sm:$0xff]
    %v865 = vld [vmem:[%s862 + $0x10] sm:$0xff]
    %v866 = vld [vmem:[%s862 + $0x18] sm:$0xff]
    %v867 = vld [vmem:[%s2] sm:$0xff]
    %v868 = vld [vmem:[%s2 + $0x8] sm:$0xff]
    %v869 = vld [vmem:[%s2 + $0x10] sm:$0xff]
    %v870 = vld [vmem:[%s2 + $0x18] sm:$0xff]
    %v871 = vld [vmem:[%s2 + $0x20] sm:$0xff]
    %v872 = vld [vmem:[%s2 + $0x28] sm:$0xff]
    %v873 = vld [vmem:[%s2 + $0x30] sm:$0xff]
    %v874 = vld [vmem:[%s2 + $0x38] sm:$0xff]
    %v875 = vld [vmem:[%s2 + $0x40] sm:$0xff]
    %v876 = vld [vmem:[%s2 + $0x48] sm:$0xff]
    %v877 = vld [vmem:[%s2 + $0x50] sm:$0xff]
    %v878 = vld [vmem:[%s2 + $0x58] sm:$0xff]
    %v879 = vld [vmem:[%s2 + $0x60] sm:$0xff]
    %v880 = vld [vmem:[%s2 + $0x68] sm:$0xff]
    %v881 = vld [vmem:[%s2 + $0x70] sm:$0xff]
    %v882 = vld [vmem:[%s2 + $0x78] sm:$0xff]
    %v883 = vld [vmem:[%s2 + $0x80] sm:$0xff]
    %v884 = vld [vmem:[%s2 + $0x88] sm:$0xff]
    %v885 = vld [vmem:[%s2 + $0x90] sm:$0xff]
    %v886 = vld [vmem:[%s2 + $0x98] sm:$0xff]
    %v887 = vld [vmem:[%s2 + $0xa0] sm:$0xff]
    %v888 = vld [vmem:[%s2 + $0xa8] sm:$0xff]
    %v889 = vld [vmem:[%s2 + $0xb0] sm:$0xff]
    %v890 = vld [vmem:[%s2 + $0xb8] sm:$0xff]
    %v891 = vld [vmem:[%s2 + $0xc0] sm:$0xff]
    %v892 = vld [vmem:[%s2 + $0xc8] sm:$0xff]
    %v893 = vld [vmem:[%s2 + $0xd0] sm:$0xff]
    %v894 = vld [vmem:[%s2 + $0xd8] sm:$0xff]
    %v895 = vld [vmem:[%s2 + $0xe0] sm:$0xff]
    %v896 = vld [vmem:[%s2 + $0xe8] sm:$0xff]
    %v897 = vld [vmem:[%s2 + $0xf0] sm:$0xff]
    %v898 = vld [vmem:[%s2 + $0xf8] sm:$0xff]
    %v899 = vld [vmem:[%s2 + $0x100] sm:$0xff]
    %v900 = vld [vmem:[%s2 + $0x108] sm:$0xff]
    %v901 = vld [vmem:[%s2 + $0x110] sm:$0xff]
    %v902 = vld [vmem:[%s2 + $0x118] sm:$0xff]
    %v903 = vld [vmem:[%s2 + $0x120] sm:$0xff]
    %v904 = vld [vmem:[%s2 + $0x128] sm:$0xff]
    %v905 = vld [vmem:[%s2 + $0x130] sm:$0xff]
    %v906 = vld [vmem:[%s2 + $0x138] sm:$0xff]
    %v907 = vld [vmem:[%s2 + $0x140] sm:$0xff]
    %v908 = vld [vmem:[%s2 + $0x148] sm:$0xff]
    %v909 = vld [vmem:[%s2 + $0x150] sm:$0xff]
    %v910 = vld [vmem:[%s2 + $0x158] sm:$0xff]
    %v911 = vld [vmem:[%s2 + $0x160] sm:$0xff]
    %v912 = vld [vmem:[%s2 + $0x168] sm:$0xff]
    %v913 = vld [vmem:[%s2 + $0x170] sm:$0xff]
    %v914 = vld [vmem:[%s2 + $0x178] sm:$0xff]
    %v915 = vld [vmem:[%s2 + $0x180] sm:$0xff]
    %v916 = vld [vmem:[%s2 + $0x188] sm:$0xff]
    %v917 = vld [vmem:[%s2 + $0x190] sm:$0xff]
    %v918 = vld [vmem:[%s2 + $0x198] sm:$0xff]
    %v919 = vld [vmem:[%s2 + $0x1a0] sm:$0xff]
    %v920 = vld [vmem:[%s2 + $0x1a8] sm:$0xff]
    %v921 = vld [vmem:[%s2 + $0x1b0] sm:$0xff]
    %v922 = vld [vmem:[%s2 + $0x1b8] sm:$0xff]
    %v923 = vld [vmem:[%s2 + $0x1c0] sm:$0xff]
    %v924 = vld [vmem:[%s2 + $0x1c8] sm:$0xff]
    %v925 = vld [vmem:[%s2 + $0x1d0] sm:$0xff]
    %v926 = vld [vmem:[%s2 + $0x1d8] sm:$0xff]
    %v927 = vld [vmem:[%s2 + $0x1e0] sm:$0xff]
    %v928 = vld [vmem:[%s2 + $0x1e8] sm:$0xff]
    %v929 = vld [vmem:[%s2 + $0x1f0] sm:$0xff]
    %v930 = vld [vmem:[%s2 + $0x1f8] sm:$0xff]
    %931 = vmatprep.subr.mxu0 %v868
    %932 = vmatpush1.msra.mxu0 %v867
    %933 = vmatprep.subr.mxu0 %v872
    %934 = vmatpush1.msra.mxu0 %v871
    %935 = vmatprep.subr.mxu0 %v876
    %936 = vmatpush1.msra.mxu0 %v875
    %937 = vmatprep.subr.mxu0 %v880
    %938 = vmatpush1.msra.mxu0 %v879
    %939 = vmatprep.subr.mxu0 %v884
    %940 = vmatpush1.msra.mxu0 %v883
    %941 = vmatprep.subr.mxu0 %v888
    %942 = vmatpush1.msra.mxu0 %v887
    %943 = vmatprep.subr.mxu0 %v892
    %944 = vmatpush1.msra.mxu0 %v891
    %945 = vmatprep.subr.mxu0 %v896
    %946 = vmatpush1.msra.mxu0 %v895
    %947 = vmatprep.subr.mxu0 %v900
    %948 = vmatpush1.msra.mxu0 %v899
    %949 = vmatprep.subr.mxu0 %v904
    %950 = vmatpush1.msra.mxu0 %v903
    %951 = vmatprep.subr.mxu0 %v908
    %952 = vmatpush1.msra.mxu0 %v907
    %953 = vmatprep.subr.mxu0 %v912
    %954 = vmatpush1.msra.mxu0 %v911
    %955 = vmatprep.subr.mxu0 %v916
    %956 = vmatpush1.msra.mxu0 %v915
    %957 = vmatprep.subr.mxu0 %v920
    %958 = vmatpush1.msra.mxu0 %v919
    %959 = vmatprep.subr.mxu0 %v924
    %960 = vmatpush1.msra.mxu0 %v923
    %961 = vmatprep.subr.mxu0 %v928
    %962 = vmatpush1.msra.mxu0 %v927
    %963 = vmatprep.subr.mxu0 0.0
    %964 = vmatpush1.msra.mxu0 0.0
    %965 = vmatprep.subr.mxu0 0.0
    %966 = vmatpush1.msra.mxu0 0.0
    %967 = vmatprep.subr.mxu0 0.0
    %968 = vmatpush1.msra.mxu0 0.0
    %969 = vmatprep.subr.mxu0 0.0
    %970 = vmatpush1.msra.mxu0 0.0
    %971 = vmatprep.subr.mxu0 0.0
    %972 = vmatpush1.msra.mxu0 0.0
    %973 = vmatprep.subr.mxu0 0.0
    %974 = vmatpush1.msra.mxu0 0.0
    %975 = vmatprep.subr.mxu0 0.0
    %976 = vmatpush1.msra.mxu0 0.0
    %977 = vmatprep.subr.mxu0 0.0
    %978 = vmatpush1.msra.mxu0 0.0
    %979 = vmatprep.subr.mxu0 0.0
    %980 = vmatpush1.msra.mxu0 0.0
    %981 = vmatprep.subr.mxu0 0.0
    %982 = vmatpush1.msra.mxu0 0.0
    %983 = vmatprep.subr.mxu0 0.0
    %984 = vmatpush1.msra.mxu0 0.0
    %985 = vmatprep.subr.mxu0 0.0
    %986 = vmatpush1.msra.mxu0 0.0
    %987 = vmatprep.subr.mxu0 0.0
    %988 = vmatpush1.msra.mxu0 0.0
    %989 = vmatprep.subr.mxu0 0.0
    %990 = vmatpush1.msra.mxu0 0.0
    %991 = vmatprep.subr.mxu0 0.0
    %992 = vmatpush1.msra.mxu0 0.0
    %993 = vmatprep.subr.mxu0 0.0
    %994 = vmatpush1.msra.mxu0 0.0
    %995 = vmatprep.mubr.f32.mxu0 0.0
    %996 = vmatmul.mubr.f32.gmra.mrb[0].mxu0 %v859
    %v997 = vpop.f32.mrb[0].mxu0
    %v998 = vadd.f32 0.0, %v997
    %v999 = vpop.f32.mrb[0].mxu0
    %v1000 = vadd.f32 0.0, %v999
    %1001 = vdwg.mxu0
    %1002 = vmatprep.subr.mxu0 %v870
    %1003 = vmatpush1.msra.mxu0 %v869
    %1004 = vmatprep.subr.mxu0 %v874
    %1005 = vmatpush1.msra.mxu0 %v873
    %1006 = vmatprep.subr.mxu0 %v878
    %1007 = vmatpush1.msra.mxu0 %v877
    %1008 = vmatprep.subr.mxu0 %v882
    %1009 = vmatpush1.msra.mxu0 %v881
    %1010 = vmatprep.subr.mxu0 %v886
    %1011 = vmatpush1.msra.mxu0 %v885
    %1012 = vmatprep.subr.mxu0 %v890
    %1013 = vmatpush1.msra.mxu0 %v889
    %1014 = vmatprep.subr.mxu0 %v894
    %1015 = vmatpush1.msra.mxu0 %v893
    %1016 = vmatprep.subr.mxu0 %v898
    %1017 = vmatpush1.msra.mxu0 %v897
    %1018 = vmatprep.subr.mxu0 %v902
    %1019 = vmatpush1.msra.mxu0 %v901
    %1020 = vmatprep.subr.mxu0 %v906
    %1021 = vmatpush1.msra.mxu0 %v905
    %1022 = vmatprep.subr.mxu0 %v910
    %1023 = vmatpush1.msra.mxu0 %v909
    %1024 = vmatprep.subr.mxu0 %v914
    %1025 = vmatpush1.msra.mxu0 %v913
    %1026 = vmatprep.subr.mxu0 %v918
    %1027 = vmatpush1.msra.mxu0 %v917
    %1028 = vmatprep.subr.mxu0 %v922
    %1029 = vmatpush1.msra.mxu0 %v921
    %1030 = vmatprep.subr.mxu0 %v926
    %1031 = vmatpush1.msra.mxu0 %v925
    %1032 = vmatprep.subr.mxu0 %v930
    %1033 = vmatpush1.msra.mxu0 %v929
    %1034 = vmatprep.subr.mxu0 0.0
    %1035 = vmatpush1.msra.mxu0 0.0
    %1036 = vmatprep.subr.mxu0 0.0
    %1037 = vmatpush1.msra.mxu0 0.0
    %1038 = vmatprep.subr.mxu0 0.0
    %1039 = vmatpush1.msra.mxu0 0.0
    %1040 = vmatprep.subr.mxu0 0.0
    %1041 = vmatpush1.msra.mxu0 0.0
    %1042 = vmatprep.subr.mxu0 0.0
    %1043 = vmatpush1.msra.mxu0 0.0
    %1044 = vmatprep.subr.mxu0 0.0
    %1045 = vmatpush1.msra.mxu0 0.0
    %1046 = vmatprep.subr.mxu0 0.0
    %1047 = vmatpush1.msra.mxu0 0.0
    %1048 = vmatprep.subr.mxu0 0.0
    %1049 = vmatpush1.msra.mxu0 0.0
    %1050 = vmatprep.subr.mxu0 0.0
    %1051 = vmatpush1.msra.mxu0 0.0
    %1052 = vmatprep.subr.mxu0 0.0
    %1053 = vmatpush1.msra.mxu0 0.0
    %1054 = vmatprep.subr.mxu0 0.0
    %1055 = vmatpush1.msra.mxu0 0.0
    %1056 = vmatprep.subr.mxu0 0.0
    %1057 = vmatpush1.msra.mxu0 0.0
    %1058 = vmatprep.subr.mxu0 0.0
    %1059 = vmatpush1.msra.mxu0 0.0
    %1060 = vmatprep.subr.mxu0 0.0
    %1061 = vmatpush1.msra.mxu0 0.0
    %1062 = vmatprep.subr.mxu0 0.0
    %1063 = vmatpush1.msra.mxu0 0.0
    %1064 = vmatprep.subr.mxu0 0.0
    %1065 = vmatpush1.msra.mxu0 0.0
    %1066 = vmatprep.mubr.f32.mxu0 0.0
    %1067 = vmatmul.mubr.f32.gmra.mrb[0].mxu0 %v859
    %v1068 = vpop.f32.mrb[0].mxu0
    %v1069 = vadd.f32 0.0, %v1068
    %v1070 = vpop.f32.mrb[0].mxu0
    %v1071 = vadd.f32 0.0, %v1070
    %1072 = vdwg.mxu0
    %v1073 = vadd.f32 %v863, %v998
    %v1074 = vadd.f32 %v864, %v1000
    %v1075 = vadd.f32 %v865, %v1069
    %v1076 = vadd.f32 %v866, %v1071
    %v1077 = vxor.u32 %v1073, 2147483648
    %v1078 = vxor.u32 %v1074, 2147483648
    %v1079 = vxor.u32 %v1075, 2147483648
    %v1080 = vmul.f32 %v1077, 1.442695
    %v1081 = vpow.pop %v1080
    %v1082 = vmul.f32 %v1078, 1.442695
    %v1083 = vpow.pop %v1082
    %v1084 = vmul.f32 %v1079, 1.442695
    %v1085 = vpow.pop %v1084
    %v1086 = vadd.f32 %v1081, 1.0
    %v1087 = vadd.f32 %v1083, 1.0
    %v1088 = vadd.f32 %v1085, 1.0
    %v1089 = vrcp.pop %v1086
    %v1090 = vmul.f32 1.0, %v1089
    %v1091 = vrcp.pop %v1087
    %v1092 = vmul.f32 1.0, %v1091
    %v1093 = vrcp.pop %v1088
    %v1094 = vmul.f32 1.0, %v1093
    %v1095 = vtanh.pop %v1076
    %v1096 = vmul.f32 %v1092, %v857
    %v1097 = vmul.f32 %v1090, %v1095
    %v1098 = vadd.f32 %v1096, %v1097
    %v1099 = vtanh.pop %v1098
    %v1100 = vmul.f32 %v1094, %v1099
    %s1101 = scalar_lea.vmem %s6, 16
    %1102 = vst [vmem:[%s1101] sm:$0xff] %v1100
    %s1103 = scalar_lea.vmem [#allocation2], 96
    %v1104 = vld [vmem:[%s1103] sm:$0xff]
    %v1105 = vld [vmem:[%s1103 + $0x8] sm:$0xff]
    %v1106 = vld [vmem:[%s1103 + $0x10] sm:$0xff]
    %v1107 = vld [vmem:[%s1103 + $0x18] sm:$0xff]
    %v1108 = vld [vmem:[%s2] sm:$0xff]
    %v1109 = vld [vmem:[%s2 + $0x8] sm:$0xff]
    %v1110 = vld [vmem:[%s2 + $0x10] sm:$0xff]
    %v1111 = vld [vmem:[%s2 + $0x18] sm:$0xff]
    %v1112 = vld [vmem:[%s2 + $0x20] sm:$0xff]
    %v1113 = vld [vmem:[%s2 + $0x28] sm:$0xff]
    %v1114 = vld [vmem:[%s2 + $0x30] sm:$0xff]
    %v1115 = vld [vmem:[%s2 + $0x38] sm:$0xff]
    %v1116 = vld [vmem:[%s2 + $0x40] sm:$0xff]
    %v1117 = vld [vmem:[%s2 + $0x48] sm:$0xff]
    %v1118 = vld [vmem:[%s2 + $0x50] sm:$0xff]
    %v1119 = vld [vmem:[%s2 + $0x58] sm:$0xff]
    %v1120 = vld [vmem:[%s2 + $0x60] sm:$0xff]
    %v1121 = vld [vmem:[%s2 + $0x68] sm:$0xff]
    %v1122 = vld [vmem:[%s2 + $0x70] sm:$0xff]
    %v1123 = vld [vmem:[%s2 + $0x78] sm:$0xff]
    %v1124 = vld [vmem:[%s2 + $0x80] sm:$0xff]
    %v1125 = vld [vmem:[%s2 + $0x88] sm:$0xff]
    %v1126 = vld [vmem:[%s2 + $0x90] sm:$0xff]
    %v1127 = vld [vmem:[%s2 + $0x98] sm:$0xff]
    %v1128 = vld [vmem:[%s2 + $0xa0] sm:$0xff]
    %v1129 = vld [vmem:[%s2 + $0xa8] sm:$0xff]
    %v1130 = vld [vmem:[%s2 + $0xb0] sm:$0xff]
    %v1131 = vld [vmem:[%s2 + $0xb8] sm:$0xff]
    %v1132 = vld [vmem:[%s2 + $0xc0] sm:$0xff]
    %v1133 = vld [vmem:[%s2 + $0xc8] sm:$0xff]
    %v1134 = vld [vmem:[%s2 + $0xd0] sm:$0xff]
    %v1135 = vld [vmem:[%s2 + $0xd8] sm:$0xff]
    %v1136 = vld [vmem:[%s2 + $0xe0] sm:$0xff]
    %v1137 = vld [vmem:[%s2 + $0xe8] sm:$0xff]
    %v1138 = vld [vmem:[%s2 + $0xf0] sm:$0xff]
    %v1139 = vld [vmem:[%s2 + $0xf8] sm:$0xff]
    %v1140 = vld [vmem:[%s2 + $0x100] sm:$0xff]
    %v1141 = vld [vmem:[%s2 + $0x108] sm:$0xff]
    %v1142 = vld [vmem:[%s2 + $0x110] sm:$0xff]
    %v1143 = vld [vmem:[%s2 + $0x118] sm:$0xff]
    %v1144 = vld [vmem:[%s2 + $0x120] sm:$0xff]
    %v1145 = vld [vmem:[%s2 + $0x128] sm:$0xff]
    %v1146 = vld [vmem:[%s2 + $0x130] sm:$0xff]
    %v1147 = vld [vmem:[%s2 + $0x138] sm:$0xff]
    %v1148 = vld [vmem:[%s2 + $0x140] sm:$0xff]
    %v1149 = vld [vmem:[%s2 + $0x148] sm:$0xff]
    %v1150 = vld [vmem:[%s2 + $0x150] sm:$0xff]
    %v1151 = vld [vmem:[%s2 + $0x158] sm:$0xff]
    %v1152 = vld [vmem:[%s2 + $0x160] sm:$0xff]
    %v1153 = vld [vmem:[%s2 + $0x168] sm:$0xff]
    %v1154 = vld [vmem:[%s2 + $0x170] sm:$0xff]
    %v1155 = vld [vmem:[%s2 + $0x178] sm:$0xff]
    %v1156 = vld [vmem:[%s2 + $0x180] sm:$0xff]
    %v1157 = vld [vmem:[%s2 + $0x188] sm:$0xff]
    %v1158 = vld [vmem:[%s2 + $0x190] sm:$0xff]
    %v1159 = vld [vmem:[%s2 + $0x198] sm:$0xff]
    %v1160 = vld [vmem:[%s2 + $0x1a0] sm:$0xff]
    %v1161 = vld [vmem:[%s2 + $0x1a8] sm:$0xff]
    %v1162 = vld [vmem:[%s2 + $0x1b0] sm:$0xff]
    %v1163 = vld [vmem:[%s2 + $0x1b8] sm:$0xff]
    %v1164 = vld [vmem:[%s2 + $0x1c0] sm:$0xff]
    %v1165 = vld [vmem:[%s2 + $0x1c8] sm:$0xff]
    %v1166 = vld [vmem:[%s2 + $0x1d0] sm:$0xff]
    %v1167 = vld [vmem:[%s2 + $0x1d8] sm:$0xff]
    %v1168 = vld [vmem:[%s2 + $0x1e0] sm:$0xff]
    %v1169 = vld [vmem:[%s2 + $0x1e8] sm:$0xff]
    %v1170 = vld [vmem:[%s2 + $0x1f0] sm:$0xff]
    %v1171 = vld [vmem:[%s2 + $0x1f8] sm:$0xff]
    %1172 = vmatprep.subr.mxu0 %v1109
    %1173 = vmatpush1.msra.mxu0 %v1108
    %1174 = vmatprep.subr.mxu0 %v1113
    %1175 = vmatpush1.msra.mxu0 %v1112
    %1176 = vmatprep.subr.mxu0 %v1117
    %1177 = vmatpush1.msra.mxu0 %v1116
    %1178 = vmatprep.subr.mxu0 %v1121
    %1179 = vmatpush1.msra.mxu0 %v1120
    %1180 = vmatprep.subr.mxu0 %v1125
    %1181 = vmatpush1.msra.mxu0 %v1124
    %1182 = vmatprep.subr.mxu0 %v1129
    %1183 = vmatpush1.msra.mxu0 %v1128
    %1184 = vmatprep.subr.mxu0 %v1133
    %1185 = vmatpush1.msra.mxu0 %v1132
    %1186 = vmatprep.subr.mxu0 %v1137
    %1187 = vmatpush1.msra.mxu0 %v1136
    %1188 = vmatprep.subr.mxu0 %v1141
    %1189 = vmatpush1.msra.mxu0 %v1140
    %1190 = vmatprep.subr.mxu0 %v1145
    %1191 = vmatpush1.msra.mxu0 %v1144
    %1192 = vmatprep.subr.mxu0 %v1149
    %1193 = vmatpush1.msra.mxu0 %v1148
    %1194 = vmatprep.subr.mxu0 %v1153
    %1195 = vmatpush1.msra.mxu0 %v1152
    %1196 = vmatprep.subr.mxu0 %v1157
    %1197 = vmatpush1.msra.mxu0 %v1156
    %1198 = vmatprep.subr.mxu0 %v1161
    %1199 = vmatpush1.msra.mxu0 %v1160
    %1200 = vmatprep.subr.mxu0 %v1165
    %1201 = vmatpush1.msra.mxu0 %v1164
    %1202 = vmatprep.subr.mxu0 %v1169
    %1203 = vmatpush1.msra.mxu0 %v1168
    %1204 = vmatprep.subr.mxu0 0.0
    %1205 = vmatpush1.msra.mxu0 0.0
    %1206 = vmatprep.subr.mxu0 0.0
    %1207 = vmatpush1.msra.mxu0 0.0
    %1208 = vmatprep.subr.mxu0 0.0
    %1209 = vmatpush1.msra.mxu0 0.0
    %1210 = vmatprep.subr.mxu0 0.0
    %1211 = vmatpush1.msra.mxu0 0.0
    %1212 = vmatprep.subr.mxu0 0.0
    %1213 = vmatpush1.msra.mxu0 0.0
    %1214 = vmatprep.subr.mxu0 0.0
    %1215 = vmatpush1.msra.mxu0 0.0
    %1216 = vmatprep.subr.mxu0 0.0
    %1217 = vmatpush1.msra.mxu0 0.0
    %1218 = vmatprep.subr.mxu0 0.0
    %1219 = vmatpush1.msra.mxu0 0.0
    %1220 = vmatprep.subr.mxu0 0.0
    %1221 = vmatpush1.msra.mxu0 0.0
    %1222 = vmatprep.subr.mxu0 0.0
    %1223 = vmatpush1.msra.mxu0 0.0
    %1224 = vmatprep.subr.mxu0 0.0
    %1225 = vmatpush1.msra.mxu0 0.0
    %1226 = vmatprep.subr.mxu0 0.0
    %1227 = vmatpush1.msra.mxu0 0.0
    %1228 = vmatprep.subr.mxu0 0.0
    %1229 = vmatpush1.msra.mxu0 0.0
    %1230 = vmatprep.subr.mxu0 0.0
    %1231 = vmatpush1.msra.mxu0 0.0
    %1232 = vmatprep.subr.mxu0 0.0
    %1233 = vmatpush1.msra.mxu0 0.0
    %1234 = vmatprep.subr.mxu0 0.0
    %1235 = vmatpush1.msra.mxu0 0.0
    %1236 = vmatprep.mubr.f32.mxu0 0.0
    %1237 = vmatmul.mubr.f32.gmra.mrb[0].mxu0 %v1100
    %v1238 = vpop.f32.mrb[0].mxu0
    %v1239 = vadd.f32 0.0, %v1238
    %v1240 = vpop.f32.mrb[0].mxu0
    %v1241 = vadd.f32 0.0, %v1240
    %1242 = vdwg.mxu0
    %1243 = vmatprep.subr.mxu0 %v1111
    %1244 = vmatpush1.msra.mxu0 %v1110
    %1245 = vmatprep.subr.mxu0 %v1115
    %1246 = vmatpush1.msra.mxu0 %v1114
    %1247 = vmatprep.subr.mxu0 %v1119
    %1248 = vmatpush1.msra.mxu0 %v1118
    %1249 = vmatprep.subr.mxu0 %v1123
    %1250 = vmatpush1.msra.mxu0 %v1122
    %1251 = vmatprep.subr.mxu0 %v1127
    %1252 = vmatpush1.msra.mxu0 %v1126
    %1253 = vmatprep.subr.mxu0 %v1131
    %1254 = vmatpush1.msra.mxu0 %v1130
    %1255 = vmatprep.subr.mxu0 %v1135
    %1256 = vmatpush1.msra.mxu0 %v1134
    %1257 = vmatprep.subr.mxu0 %v1139
    %1258 = vmatpush1.msra.mxu0 %v1138
    %1259 = vmatprep.subr.mxu0 %v1143
    %1260 = vmatpush1.msra.mxu0 %v1142
    %1261 = vmatprep.subr.mxu0 %v1147
    %1262 = vmatpush1.msra.mxu0 %v1146
    %1263 = vmatprep.subr.mxu0 %v1151
    %1264 = vmatpush1.msra.mxu0 %v1150
    %1265 = vmatprep.subr.mxu0 %v1155
    %1266 = vmatpush1.msra.mxu0 %v1154
    %1267 = vmatprep.subr.mxu0 %v1159
    %1268 = vmatpush1.msra.mxu0 %v1158
    %1269 = vmatprep.subr.mxu0 %v1163
    %1270 = vmatpush1.msra.mxu0 %v1162
    %1271 = vmatprep.subr.mxu0 %v1167
    %1272 = vmatpush1.msra.mxu0 %v1166
    %1273 = vmatprep.subr.mxu0 %v1171
    %1274 = vmatpush1.msra.mxu0 %v1170
    %1275 = vmatprep.subr.mxu0 0.0
    %1276 = vmatpush1.msra.mxu0 0.0
    %1277 = vmatprep.subr.mxu0 0.0
    %1278 = vmatpush1.msra.mxu0 0.0
    %1279 = vmatprep.subr.mxu0 0.0
    %1280 = vmatpush1.msra.mxu0 0.0
    %1281 = vmatprep.subr.mxu0 0.0
    %1282 = vmatpush1.msra.mxu0 0.0
    %1283 = vmatprep.subr.mxu0 0.0
    %1284 = vmatpush1.msra.mxu0 0.0
    %1285 = vmatprep.subr.mxu0 0.0
    %1286 = vmatpush1.msra.mxu0 0.0
    %1287 = vmatprep.subr.mxu0 0.0
    %1288 = vmatpush1.msra.mxu0 0.0
    %1289 = vmatprep.subr.mxu0 0.0
    %1290 = vmatpush1.msra.mxu0 0.0
    %1291 = vmatprep.subr.mxu0 0.0
    %1292 = vmatpush1.msra.mxu0 0.0
    %1293 = vmatprep.subr.mxu0 0.0
    %1294 = vmatpush1.msra.mxu0 0.0
    %1295 = vmatprep.subr.mxu0 0.0
    %1296 = vmatpush1.msra.mxu0 0.0
    %1297 = vmatprep.subr.mxu0 0.0
    %1298 = vmatpush1.msra.mxu0 0.0
    %1299 = vmatprep.subr.mxu0 0.0
    %1300 = vmatpush1.msra.mxu0 0.0
    %1301 = vmatprep.subr.mxu0 0.0
    %1302 = vmatpush1.msra.mxu0 0.0
    %1303 = vmatprep.subr.mxu0 0.0
    %1304 = vmatpush1.msra.mxu0 0.0
    %1305 = vmatprep.subr.mxu0 0.0
    %1306 = vmatpush1.msra.mxu0 0.0
    %1307 = vmatprep.mubr.f32.mxu0 0.0
    %1308 = vmatmul.mubr.f32.gmra.mrb[0].mxu0 %v1100
    %v1309 = vpop.f32.mrb[0].mxu0
    %v1310 = vadd.f32 0.0, %v1309
    %v1311 = vpop.f32.mrb[0].mxu0
    %v1312 = vadd.f32 0.0, %v1311
    %1313 = vdwg.mxu0
    %v1314 = vadd.f32 %v1104, %v1239
    %v1315 = vadd.f32 %v1105, %v1241
    %v1316 = vadd.f32 %v1106, %v1310
    %v1317 = vadd.f32 %v1107, %v1312
    %v1318 = vxor.u32 %v1314, 2147483648
    %v1319 = vxor.u32 %v1315, 2147483648
    %v1320 = vxor.u32 %v1316, 2147483648
    %v1321 = vmul.f32 %v1318, 1.442695
    %v1322 = vpow.pop %v1321
    %v1323 = vmul.f32 %v1319, 1.442695
    %v1324 = vpow.pop %v1323
    %v1325 = vmul.f32 %v1320, 1.442695
    %v1326 = vpow.pop %v1325
    %v1327 = vadd.f32 %v1322, 1.0
    %v1328 = vadd.f32 %v1324, 1.0
    %v1329 = vadd.f32 %v1326, 1.0
    %v1330 = vrcp.pop %v1327
    %v1331 = vmul.f32 1.0, %v1330
    %v1332 = vrcp.pop %v1328
    %v1333 = vmul.f32 1.0, %v1332
    %v1334 = vrcp.pop %v1329
    %v1335 = vmul.f32 1.0, %v1334
    %v1336 = vtanh.pop %v1317
    %v1337 = vmul.f32 %v1333, %v1098
    %v1338 = vmul.f32 %v1331, %v1336
    %v1339 = vadd.f32 %v1337, %v1338
    %v1340 = vtanh.pop %v1339
    %v1341 = vmul.f32 %v1335, %v1340
    %s1342 = scalar_lea.vmem %s6, 24
    %1343 = vst [vmem:[%s1342] sm:$0xff] %v1341
    %s1344 = scalar_lea.vmem [#allocation2], 128
    %v1345 = vld [vmem:[%s1344] sm:$0xff]
    %v1346 = vld [vmem:[%s1344 + $0x8] sm:$0xff]
    %v1347 = vld [vmem:[%s1344 + $0x10] sm:$0xff]
    %v1348 = vld [vmem:[%s1344 + $0x18] sm:$0xff]
    %v1349 = vld [vmem:[%s2] sm:$0xff]
    %v1350 = vld [vmem:[%s2 + $0x8] sm:$0xff]
    %v1351 = vld [vmem:[%s2 + $0x10] sm:$0xff]
    %v1352 = vld [vmem:[%s2 + $0x18] sm:$0xff]
    %v1353 = vld [vmem:[%s2 + $0x20] sm:$0xff]
    %v1354 = vld [vmem:[%s2 + $0x28] sm:$0xff]
    %v1355 = vld [vmem:[%s2 + $0x30] sm:$0xff]
    %v1356 = vld [vmem:[%s2 + $0x38] sm:$0xff]
    %v1357 = vld [vmem:[%s2 + $0x40] sm:$0xff]
    %v1358 = vld [vmem:[%s2 + $0x48] sm:$0xff]
    %v1359 = vld [vmem:[%s2 + $0x50] sm:$0xff]
    %v1360 = vld [vmem:[%s2 + $0x58] sm:$0xff]
    %v1361 = vld [vmem:[%s2 + $0x60] sm:$0xff]
    %v1362 = vld [vmem:[%s2 + $0x68] sm:$0xff]
    %v1363 = vld [vmem:[%s2 + $0x70] sm:$0xff]
    %v1364 = vld [vmem:[%s2 + $0x78] sm:$0xff]
    %v1365 = vld [vmem:[%s2 + $0x80] sm:$0xff]
    %v1366 = vld [vmem:[%s2 + $0x88] sm:$0xff]
    %v1367 = vld [vmem:[%s2 + $0x90] sm:$0xff]
    %v1368 = vld [vmem:[%s2 + $0x98] sm:$0xff]
    %v1369 = vld [vmem:[%s2 + $0xa0] sm:$0xff]
    %v1370 = vld [vmem:[%s2 + $0xa8] sm:$0xff]
    %v1371 = vld [vmem:[%s2 + $0xb0] sm:$0xff]
    %v1372 = vld [vmem:[%s2 + $0xb8] sm:$0xff]
    %v1373 = vld [vmem:[%s2 + $0xc0] sm:$0xff]
    %v1374 = vld [vmem:[%s2 + $0xc8] sm:$0xff]
    %v1375 = vld [vmem:[%s2 + $0xd0] sm:$0xff]
    %v1376 = vld [vmem:[%s2 + $0xd8] sm:$0xff]
    %v1377 = vld [vmem:[%s2 + $0xe0] sm:$0xff]
    %v1378 = vld [vmem:[%s2 + $0xe8] sm:$0xff]
    %v1379 = vld [vmem:[%s2 + $0xf0] sm:$0xff]
    %v1380 = vld [vmem:[%s2 + $0xf8] sm:$0xff]
    %v1381 = vld [vmem:[%s2 + $0x100] sm:$0xff]
    %v1382 = vld [vmem:[%s2 + $0x108] sm:$0xff]
    %v1383 = vld [vmem:[%s2 + $0x110] sm:$0xff]
    %v1384 = vld [vmem:[%s2 + $0x118] sm:$0xff]
    %v1385 = vld [vmem:[%s2 + $0x120] sm:$0xff]
    %v1386 = vld [vmem:[%s2 + $0x128] sm:$0xff]
    %v1387 = vld [vmem:[%s2 + $0x130] sm:$0xff]
    %v1388 = vld [vmem:[%s2 + $0x138] sm:$0xff]
    %v1389 = vld [vmem:[%s2 + $0x140] sm:$0xff]
    %v1390 = vld [vmem:[%s2 + $0x148] sm:$0xff]
    %v1391 = vld [vmem:[%s2 + $0x150] sm:$0xff]
    %v1392 = vld [vmem:[%s2 + $0x158] sm:$0xff]
    %v1393 = vld [vmem:[%s2 + $0x160] sm:$0xff]
    %v1394 = vld [vmem:[%s2 + $0x168] sm:$0xff]
    %v1395 = vld [vmem:[%s2 + $0x170] sm:$0xff]
    %v1396 = vld [vmem:[%s2 + $0x178] sm:$0xff]
    %v1397 = vld [vmem:[%s2 + $0x180] sm:$0xff]
    %v1398 = vld [vmem:[%s2 + $0x188] sm:$0xff]
    %v1399 = vld [vmem:[%s2 + $0x190] sm:$0xff]
    %v1400 = vld [vmem:[%s2 + $0x198] sm:$0xff]
    %v1401 = vld [vmem:[%s2 + $0x1a0] sm:$0xff]
    %v1402 = vld [vmem:[%s2 + $0x1a8] sm:$0xff]
    %v1403 = vld [vmem:[%s2 + $0x1b0] sm:$0xff]
    %v1404 = vld [vmem:[%s2 + $0x1b8] sm:$0xff]
    %v1405 = vld [vmem:[%s2 + $0x1c0] sm:$0xff]
    %v1406 = vld [vmem:[%s2 + $0x1c8] sm:$0xff]
    %v1407 = vld [vmem:[%s2 + $0x1d0] sm:$0xff]
    %v1408 = vld [vmem:[%s2 + $0x1d8] sm:$0xff]
    %v1409 = vld [vmem:[%s2 + $0x1e0] sm:$0xff]
    %v1410 = vld [vmem:[%s2 + $0x1e8] sm:$0xff]
    %v1411 = vld [vmem:[%s2 + $0x1f0] sm:$0xff]
    %v1412 = vld [vmem:[%s2 + $0x1f8] sm:$0xff]
    %1413 = vmatprep.subr.mxu0 %v1350
    %1414 = vmatpush1.msra.mxu0 %v1349
    %1415 = vmatprep.subr.mxu0 %v1354
    %1416 = vmatpush1.msra.mxu0 %v1353
    %1417 = vmatprep.subr.mxu0 %v1358
    %1418 = vmatpush1.msra.mxu0 %v1357
    %1419 = vmatprep.subr.mxu0 %v1362
    %1420 = vmatpush1.msra.mxu0 %v1361
    %1421 = vmatprep.subr.mxu0 %v1366
    %1422 = vmatpush1.msra.mxu0 %v1365
    %1423 = vmatprep.subr.mxu0 %v1370
    %1424 = vmatpush1.msra.mxu0 %v1369
    %1425 = vmatprep.subr.mxu0 %v1374
    %1426 = vmatpush1.msra.mxu0 %v1373
    %1427 = vmatprep.subr.mxu0 %v1378
    %1428 = vmatpush1.msra.mxu0 %v1377
    %1429 = vmatprep.subr.mxu0 %v1382
    %1430 = vmatpush1.msra.mxu0 %v1381
    %1431 = vmatprep.subr.mxu0 %v1386
    %1432 = vmatpush1.msra.mxu0 %v1385
    %1433 = vmatprep.subr.mxu0 %v1390
    %1434 = vmatpush1.msra.mxu0 %v1389
    %1435 = vmatprep.subr.mxu0 %v1394
    %1436 = vmatpush1.msra.mxu0 %v1393
    %1437 = vmatprep.subr.mxu0 %v1398
    %1438 = vmatpush1.msra.mxu0 %v1397
    %1439 = vmatprep.subr.mxu0 %v1402
    %1440 = vmatpush1.msra.mxu0 %v1401
    %1441 = vmatprep.subr.mxu0 %v1406
    %1442 = vmatpush1.msra.mxu0 %v1405
    %1443 = vmatprep.subr.mxu0 %v1410
    %1444 = vmatpush1.msra.mxu0 %v1409
    %1445 = vmatprep.subr.mxu0 0.0
    %1446 = vmatpush1.msra.mxu0 0.0
    %1447 = vmatprep.subr.mxu0 0.0
    %1448 = vmatpush1.msra.mxu0 0.0
    %1449 = vmatprep.subr.mxu0 0.0
    %1450 = vmatpush1.msra.mxu0 0.0
    %1451 = vmatprep.subr.mxu0 0.0
    %1452 = vmatpush1.msra.mxu0 0.0
    %1453 = vmatprep.subr.mxu0 0.0
    %1454 = vmatpush1.msra.mxu0 0.0
    %1455 = vmatprep.subr.mxu0 0.0
    %1456 = vmatpush1.msra.mxu0 0.0
    %1457 = vmatprep.subr.mxu0 0.0
    %1458 = vmatpush1.msra.mxu0 0.0
    %1459 = vmatprep.subr.mxu0 0.0
    %1460 = vmatpush1.msra.mxu0 0.0
    %1461 = vmatprep.subr.mxu0 0.0
    %1462 = vmatpush1.msra.mxu0 0.0
    %1463 = vmatprep.subr.mxu0 0.0
    %1464 = vmatpush1.msra.mxu0 0.0
    %1465 = vmatprep.subr.mxu0 0.0
    %1466 = vmatpush1.msra.mxu0 0.0
    %1467 = vmatprep.subr.mxu0 0.0
    %1468 = vmatpush1.msra.mxu0 0.0
    %1469 = vmatprep.subr.mxu0 0.0
    %1470 = vmatpush1.msra.mxu0 0.0
    %1471 = vmatprep.subr.mxu0 0.0
    %1472 = vmatpush1.msra.mxu0 0.0
    %1473 = vmatprep.subr.mxu0 0.0
    %1474 = vmatpush1.msra.mxu0 0.0
    %1475 = vmatprep.subr.mxu0 0.0
    %1476 = vmatpush1.msra.mxu0 0.0
    %1477 = vmatprep.mubr.f32.mxu0 0.0
    %1478 = vmatmul.mubr.f32.gmra.mrb[0].mxu0 %v1341
    %v1479 = vpop.f32.mrb[0].mxu0
    %v1480 = vadd.f32 0.0, %v1479
    %v1481 = vpop.f32.mrb[0].mxu0
    %v1482 = vadd.f32 0.0, %v1481
    %1483 = vdwg.mxu0
    %1484 = vmatprep.subr.mxu0 %v1352
    %1485 = vmatpush1.msra.mxu0 %v1351
    %1486 = vmatprep.subr.mxu0 %v1356
    %1487 = vmatpush1.msra.mxu0 %v1355
    %1488 = vmatprep.subr.mxu0 %v1360
    %1489 = vmatpush1.msra.mxu0 %v1359
    %1490 = vmatprep.subr.mxu0 %v1364
    %1491 = vmatpush1.msra.mxu0 %v1363
    %1492 = vmatprep.subr.mxu0 %v1368
    %1493 = vmatpush1.msra.mxu0 %v1367
    %1494 = vmatprep.subr.mxu0 %v1372
    %1495 = vmatpush1.msra.mxu0 %v1371
    %1496 = vmatprep.subr.mxu0 %v1376
    %1497 = vmatpush1.msra.mxu0 %v1375
    %1498 = vmatprep.subr.mxu0 %v1380
    %1499 = vmatpush1.msra.mxu0 %v1379
    %1500 = vmatprep.subr.mxu0 %v1384
    %1501 = vmatpush1.msra.mxu0 %v1383
    %1502 = vmatprep.subr.mxu0 %v1388
    %1503 = vmatpush1.msra.mxu0 %v1387
    %1504 = vmatprep.subr.mxu0 %v1392
    %1505 = vmatpush1.msra.mxu0 %v1391
    %1506 = vmatprep.subr.mxu0 %v1396
    %1507 = vmatpush1.msra.mxu0 %v1395
    %1508 = vmatprep.subr.mxu0 %v1400
    %1509 = vmatpush1.msra.mxu0 %v1399
    %1510 = vmatprep.subr.mxu0 %v1404
    %1511 = vmatpush1.msra.mxu0 %v1403
    %1512 = vmatprep.subr.mxu0 %v1408
    %1513 = vmatpush1.msra.mxu0 %v1407
    %1514 = vmatprep.subr.mxu0 %v1412
    %1515 = vmatpush1.msra.mxu0 %v1411
    %1516 = vmatprep.subr.mxu0 0.0
    %1517 = vmatpush1.msra.mxu0 0.0
    %1518 = vmatprep.subr.mxu0 0.0
    %1519 = vmatpush1.msra.mxu0 0.0
    %1520 = vmatprep.subr.mxu0 0.0
    %1521 = vmatpush1.msra.mxu0 0.0
    %1522 = vmatprep.subr.mxu0 0.0
    %1523 = vmatpush1.msra.mxu0 0.0
    %1524 = vmatprep.subr.mxu0 0.0
    %1525 = vmatpush1.msra.mxu0 0.0
    %1526 = vmatprep.subr.mxu0 0.0
    %1527 = vmatpush1.msra.mxu0 0.0
    %1528 = vmatprep.subr.mxu0 0.0
    %1529 = vmatpush1.msra.mxu0 0.0
    %1530 = vmatprep.subr.mxu0 0.0
    %1531 = vmatpush1.msra.mxu0 0.0
    %1532 = vmatprep.subr.mxu0 0.0
    %1533 = vmatpush1.msra.mxu0 0.0
    %1534 = vmatprep.subr.mxu0 0.0
    %1535 = vmatpush1.msra.mxu0 0.0
    %1536 = vmatprep.subr.mxu0 0.0
    %1537 = vmatpush1.msra.mxu0 0.0
    %1538 = vmatprep.subr.mxu0 0.0
    %1539 = vmatpush1.msra.mxu0 0.0
    %1540 = vmatprep.subr.mxu0 0.0
    %1541 = vmatpush1.msra.mxu0 0.0
    %1542 = vmatprep.subr.mxu0 0.0
    %1543 = vmatpush1.msra.mxu0 0.0
    %1544 = vmatprep.subr.mxu0 0.0
    %1545 = vmatpush1.msra.mxu0 0.0
    %1546 = vmatprep.subr.mxu0 0.0
    %1547 = vmatpush1.msra.mxu0 0.0
    %1548 = vmatprep.mubr.f32.mxu0 0.0
    %1549 = vmatmul.mubr.f32.gmra.mrb[0].mxu0 %v1341
    %v1550 = vpop.f32.mrb[0].mxu0
    %v1551 = vadd.f32 0.0, %v1550
    %v1552 = vpop.f32.mrb[0].mxu0
    %v1553 = vadd.f32 0.0, %v1552
    %1554 = vdwg.mxu0
    %v1555 = vadd.f32 %v1345, %v1480
    %v1556 = vadd.f32 %v1346, %v1482
    %v1557 = vadd.f32 %v1347, %v1551
    %v1558 = vadd.f32 %v1348, %v1553
    %v1559 = vxor.u32 %v1555, 2147483648
    %v1560 = vxor.u32 %v1556, 2147483648
    %v1561 = vxor.u32 %v1557, 2147483648
    %v1562 = vmul.f32 %v1559, 1.442695
    %v1563 = vpow.pop %v1562
    %v1564 = vmul.f32 %v1560, 1.442695
    %v1565 = vpow.pop %v1564
    %v1566 = vmul.f32 %v1561, 1.442695
    %v1567 = vpow.pop %v1566
    %v1568 = vadd.f32 %v1563, 1.0
    %v1569 = vadd.f32 %v1565, 1.0
    %v1570 = vadd.f32 %v1567, 1.0
    %v1571 = vrcp.pop %v1568
    %v1572 = vmul.f32 1.0, %v1571
    %v1573 = vrcp.pop %v1569
    %v1574 = vmul.f32 1.0, %v1573
    %v1575 = vrcp.pop %v1570
    %v1576 = vmul.f32 1.0, %v1575
    %v1577 = vtanh.pop %v1558
    %v1578 = vmul.f32 %v1574, %v1339
    %v1579 = vmul.f32 %v1572, %v1577
    %v1580 = vadd.f32 %v1578, %v1579
    %v1581 = vtanh.pop %v1580
    %v1582 = vmul.f32 %v1576, %v1581
    %s1583 = scalar_lea.vmem %s6, 32
    %1584 = vst [vmem:[%s1583] sm:$0xff] %v1582
    %s1585 = scalar_lea.vmem [#allocation2], 160
    %v1586 = vld [vmem:[%s1585] sm:$0xff]
    %v1587 = vld [vmem:[%s1585 + $0x8] sm:$0xff]
    %v1588 = vld [vmem:[%s1585 + $0x10] sm:$0xff]
    %v1589 = vld [vmem:[%s1585 + $0x18] sm:$0xff]
    %v1590 = vld [vmem:[%s2] sm:$0xff]
    %v1591 = vld [vmem:[%s2 + $0x8] sm:$0xff]
    %v1592 = vld [vmem:[%s2 + $0x10] sm:$0xff]
    %v1593 = vld [vmem:[%s2 + $0x18] sm:$0xff]
    %v1594 = vld [vmem:[%s2 + $0x20] sm:$0xff]
    %v1595 = vld [vmem:[%s2 + $0x28] sm:$0xff]
    %v1596 = vld [vmem:[%s2 + $0x30] sm:$0xff]
    %v1597 = vld [vmem:[%s2 + $0x38] sm:$0xff]
    %v1598 = vld [vmem:[%s2 + $0x40] sm:$0xff]
    %v1599 = vld [vmem:[%s2 + $0x48] sm:$0xff]
    %v1600 = vld [vmem:[%s2 + $0x50] sm:$0xff]
    %v1601 = vld [vmem:[%s2 + $0x58] sm:$0xff]
    %v1602 = vld [vmem:[%s2 + $0x60] sm:$0xff]
    %v1603 = vld [vmem:[%s2 + $0x68] sm:$0xff]
    %v1604 = vld [vmem:[%s2 + $0x70] sm:$0xff]
    %v1605 = vld [vmem:[%s2 + $0x78] sm:$0xff]
    %v1606 = vld [vmem:[%s2 + $0x80] sm:$0xff]
    %v1607 = vld [vmem:[%s2 + $0x88] sm:$0xff]
    %v1608 = vld [vmem:[%s2 + $0x90] sm:$0xff]
    %v1609 = vld [vmem:[%s2 + $0x98] sm:$0xff]
    %v1610 = vld [vmem:[%s2 + $0xa0] sm:$0xff]
    %v1611 = vld [vmem:[%s2 + $0xa8] sm:$0xff]
    %v1612 = vld [vmem:[%s2 + $0xb0] sm:$0xff]
    %v1613 = vld [vmem:[%s2 + $0xb8] sm:$0xff]
    %v1614 = vld [vmem:[%s2 + $0xc0] sm:$0xff]
    %v1615 = vld [vmem:[%s2 + $0xc8] sm:$0xff]
    %v1616 = vld [vmem:[%s2 + $0xd0] sm:$0xff]
    %v1617 = vld [vmem:[%s2 + $0xd8] sm:$0xff]
    %v1618 = vld [vmem:[%s2 + $0xe0] sm:$0xff]
    %v1619 = vld [vmem:[%s2 + $0xe8] sm:$0xff]
    %v1620 = vld [vmem:[%s2 + $0xf0] sm:$0xff]
    %v1621 = vld [vmem:[%s2 + $0xf8] sm:$0xff]
    %v1622 = vld [vmem:[%s2 + $0x100] sm:$0xff]
    %v1623 = vld [vmem:[%s2 + $0x108] sm:$0xff]
    %v1624 = vld [vmem:[%s2 + $0x110] sm:$0xff]
    %v1625 = vld [vmem:[%s2 + $0x118] sm:$0xff]
    %v1626 = vld [vmem:[%s2 + $0x120] sm:$0xff]
    %v1627 = vld [vmem:[%s2 + $0x128] sm:$0xff]
    %v1628 = vld [vmem:[%s2 + $0x130] sm:$0xff]
    %v1629 = vld [vmem:[%s2 + $0x138] sm:$0xff]
    %v1630 = vld [vmem:[%s2 + $0x140] sm:$0xff]
    %v1631 = vld [vmem:[%s2 + $0x148] sm:$0xff]
    %v1632 = vld [vmem:[%s2 + $0x150] sm:$0xff]
    %v1633 = vld [vmem:[%s2 + $0x158] sm:$0xff]
    %v1634 = vld [vmem:[%s2 + $0x160] sm:$0xff]
    %v1635 = vld [vmem:[%s2 + $0x168] sm:$0xff]
    %v1636 = vld [vmem:[%s2 + $0x170] sm:$0xff]
    %v1637 = vld [vmem:[%s2 + $0x178] sm:$0xff]
    %v1638 = vld [vmem:[%s2 + $0x180] sm:$0xff]
    %v1639 = vld [vmem:[%s2 + $0x188] sm:$0xff]
    %v1640 = vld [vmem:[%s2 + $0x190] sm:$0xff]
    %v1641 = vld [vmem:[%s2 + $0x198] sm:$0xff]
    %v1642 = vld [vmem:[%s2 + $0x1a0] sm:$0xff]
    %v1643 = vld [vmem:[%s2 + $0x1a8] sm:$0xff]
    %v1644 = vld [vmem:[%s2 + $0x1b0] sm:$0xff]
    %v1645 = vld [vmem:[%s2 + $0x1b8] sm:$0xff]
    %v1646 = vld [vmem:[%s2 + $0x1c0] sm:$0xff]
    %v1647 = vld [vmem:[%s2 + $0x1c8] sm:$0xff]
    %v1648 = vld [vmem:[%s2 + $0x1d0] sm:$0xff]
    %v1649 = vld [vmem:[%s2 + $0x1d8] sm:$0xff]
    %v1650 = vld [vmem:[%s2 + $0x1e0] sm:$0xff]
    %v1651 = vld [vmem:[%s2 + $0x1e8] sm:$0xff]
    %v1652 = vld [vmem:[%s2 + $0x1f0] sm:$0xff]
    %v1653 = vld [vmem:[%s2 + $0x1f8] sm:$0xff]
    %1654 = vmatprep.subr.mxu0 %v1591
    %1655 = vmatpush1.msra.mxu0 %v1590
    %1656 = vmatprep.subr.mxu0 %v1595
    %1657 = vmatpush1.msra.mxu0 %v1594
    %1658 = vmatprep.subr.mxu0 %v1599
    %1659 = vmatpush1.msra.mxu0 %v1598
    %1660 = vmatprep.subr.mxu0 %v1603
    %1661 = vmatpush1.msra.mxu0 %v1602
    %1662 = vmatprep.subr.mxu0 %v1607
    %1663 = vmatpush1.msra.mxu0 %v1606
    %1664 = vmatprep.subr.mxu0 %v1611
    %1665 = vmatpush1.msra.mxu0 %v1610
    %1666 = vmatprep.subr.mxu0 %v1615
    %1667 = vmatpush1.msra.mxu0 %v1614
    %1668 = vmatprep.subr.mxu0 %v1619
    %1669 = vmatpush1.msra.mxu0 %v1618
    %1670 = vmatprep.subr.mxu0 %v1623
    %1671 = vmatpush1.msra.mxu0 %v1622
    %1672 = vmatprep.subr.mxu0 %v1627
    %1673 = vmatpush1.msra.mxu0 %v1626
    %1674 = vmatprep.subr.mxu0 %v1631
    %1675 = vmatpush1.msra.mxu0 %v1630
    %1676 = vmatprep.subr.mxu0 %v1635
    %1677 = vmatpush1.msra.mxu0 %v1634
    %1678 = vmatprep.subr.mxu0 %v1639
    %1679 = vmatpush1.msra.mxu0 %v1638
    %1680 = vmatprep.subr.mxu0 %v1643
    %1681 = vmatpush1.msra.mxu0 %v1642
    %1682 = vmatprep.subr.mxu0 %v1647
    %1683 = vmatpush1.msra.mxu0 %v1646
    %1684 = vmatprep.subr.mxu0 %v1651
    %1685 = vmatpush1.msra.mxu0 %v1650
    %1686 = vmatprep.subr.mxu0 0.0
    %1687 = vmatpush1.msra.mxu0 0.0
    %1688 = vmatprep.subr.mxu0 0.0
    %1689 = vmatpush1.msra.mxu0 0.0
    %1690 = vmatprep.subr.mxu0 0.0
    %1691 = vmatpush1.msra.mxu0 0.0
    %1692 = vmatprep.subr.mxu0 0.0
    %1693 = vmatpush1.msra.mxu0 0.0
    %1694 = vmatprep.subr.mxu0 0.0
    %1695 = vmatpush1.msra.mxu0 0.0
    %1696 = vmatprep.subr.mxu0 0.0
    %1697 = vmatpush1.msra.mxu0 0.0
    %1698 = vmatprep.subr.mxu0 0.0
    %1699 = vmatpush1.msra.mxu0 0.0
    %1700 = vmatprep.subr.mxu0 0.0
    %1701 = vmatpush1.msra.mxu0 0.0
    %1702 = vmatprep.subr.mxu0 0.0
    %1703 = vmatpush1.msra.mxu0 0.0
    %1704 = vmatprep.subr.mxu0 0.0
    %1705 = vmatpush1.msra.mxu0 0.0
    %1706 = vmatprep.subr.mxu0 0.0
    %1707 = vmatpush1.msra.mxu0 0.0
    %1708 = vmatprep.subr.mxu0 0.0
    %1709 = vmatpush1.msra.mxu0 0.0
    %1710 = vmatprep.subr.mxu0 0.0
    %1711 = vmatpush1.msra.mxu0 0.0
    %1712 = vmatprep.subr.mxu0 0.0
    %1713 = vmatpush1.msra.mxu0 0.0
    %1714 = vmatprep.subr.mxu0 0.0
    %1715 = vmatpush1.msra.mxu0 0.0
    %1716 = vmatprep.subr.mxu0 0.0
    %1717 = vmatpush1.msra.mxu0 0.0
    %1718 = vmatprep.mubr.f32.mxu0 0.0
    %1719 = vmatmul.mubr.f32.gmra.mrb[0].mxu0 %v1582
    %v1720 = vpop.f32.mrb[0].mxu0
    %v1721 = vadd.f32 0.0, %v1720
    %v1722 = vpop.f32.mrb[0].mxu0
    %v1723 = vadd.f32 0.0, %v1722
    %1724 = vdwg.mxu0
    %1725 = vmatprep.subr.mxu0 %v1593
    %1726 = vmatpush1.msra.mxu0 %v1592
    %1727 = vmatprep.subr.mxu0 %v1597
    %1728 = vmatpush1.msra.mxu0 %v1596
    %1729 = vmatprep.subr.mxu0 %v1601
    %1730 = vmatpush1.msra.mxu0 %v1600
    %1731 = vmatprep.subr.mxu0 %v1605
    %1732 = vmatpush1.msra.mxu0 %v1604
    %1733 = vmatprep.subr.mxu0 %v1609
    %1734 = vmatpush1.msra.mxu0 %v1608
    %1735 = vmatprep.subr.mxu0 %v1613
    %1736 = vmatpush1.msra.mxu0 %v1612
    %1737 = vmatprep.subr.mxu0 %v1617
    %1738 = vmatpush1.msra.mxu0 %v1616
    %1739 = vmatprep.subr.mxu0 %v1621
    %1740 = vmatpush1.msra.mxu0 %v1620
    %1741 = vmatprep.subr.mxu0 %v1625
    %1742 = vmatpush1.msra.mxu0 %v1624
    %1743 = vmatprep.subr.mxu0 %v1629
    %1744 = vmatpush1.msra.mxu0 %v1628
    %1745 = vmatprep.subr.mxu0 %v1633
    %1746 = vmatpush1.msra.mxu0 %v1632
    %1747 = vmatprep.subr.mxu0 %v1637
    %1748 = vmatpush1.msra.mxu0 %v1636
    %1749 = vmatprep.subr.mxu0 %v1641
    %1750 = vmatpush1.msra.mxu0 %v1640
    %1751 = vmatprep.subr.mxu0 %v1645
    %1752 = vmatpush1.msra.mxu0 %v1644
    %1753 = vmatprep.subr.mxu0 %v1649
    %1754 = vmatpush1.msra.mxu0 %v1648
    %1755 = vmatprep.subr.mxu0 %v1653
    %1756 = vmatpush1.msra.mxu0 %v1652
    %1757 = vmatprep.subr.mxu0 0.0
    %1758 = vmatpush1.msra.mxu0 0.0
    %1759 = vmatprep.subr.mxu0 0.0
    %1760 = vmatpush1.msra.mxu0 0.0
    %1761 = vmatprep.subr.mxu0 0.0
    %1762 = vmatpush1.msra.mxu0 0.0
    %1763 = vmatprep.subr.mxu0 0.0
    %1764 = vmatpush1.msra.mxu0 0.0
    %1765 = vmatprep.subr.mxu0 0.0
    %1766 = vmatpush1.msra.mxu0 0.0
    %1767 = vmatprep.subr.mxu0 0.0
    %1768 = vmatpush1.msra.mxu0 0.0
    %1769 = vmatprep.subr.mxu0 0.0
    %1770 = vmatpush1.msra.mxu0 0.0
    %1771 = vmatprep.subr.mxu0 0.0
    %1772 = vmatpush1.msra.mxu0 0.0
    %1773 = vmatprep.subr.mxu0 0.0
    %1774 = vmatpush1.msra.mxu0 0.0
    %1775 = vmatprep.subr.mxu0 0.0
    %1776 = vmatpush1.msra.mxu0 0.0
    %1777 = vmatprep.subr.mxu0 0.0
    %1778 = vmatpush1.msra.mxu0 0.0
    %1779 = vmatprep.subr.mxu0 0.0
    %1780 = vmatpush1.msra.mxu0 0.0
    %1781 = vmatprep.subr.mxu0 0.0
    %1782 = vmatpush1.msra.mxu0 0.0
    %1783 = vmatprep.subr.mxu0 0.0
    %1784 = vmatpush1.msra.mxu0 0.0
    %1785 = vmatprep.subr.mxu0 0.0
    %1786 = vmatpush1.msra.mxu0 0.0
    %1787 = vmatprep.subr.mxu0 0.0
    %1788 = vmatpush1.msra.mxu0 0.0
    %1789 = vmatprep.mubr.f32.mxu0 0.0
    %1790 = vmatmul.mubr.f32.gmra.mrb[0].mxu0 %v1582
    %v1791 = vpop.f32.mrb[0].mxu0
    %v1792 = vadd.f32 0.0, %v1791
    %v1793 = vpop.f32.mrb[0].mxu0
    %v1794 = vadd.f32 0.0, %v1793
    %1795 = vdwg.mxu0
    %v1796 = vadd.f32 %v1586, %v1721
    %v1797 = vadd.f32 %v1587, %v1723
    %v1798 = vadd.f32 %v1588, %v1792
    %v1799 = vadd.f32 %v1589, %v1794
    %v1800 = vxor.u32 %v1796, 2147483648
    %v1801 = vxor.u32 %v1797, 2147483648
    %v1802 = vxor.u32 %v1798, 2147483648
    %v1803 = vmul.f32 %v1800, 1.442695
    %v1804 = vpow.pop %v1803
    %v1805 = vmul.f32 %v1801, 1.442695
    %v1806 = vpow.pop %v1805
    %v1807 = vmul.f32 %v1802, 1.442695
    %v1808 = vpow.pop %v1807
    %v1809 = vadd.f32 %v1804, 1.0
    %v1810 = vadd.f32 %v1806, 1.0
    %v1811 = vadd.f32 %v1808, 1.0
    %v1812 = vrcp.pop %v1809
    %v1813 = vmul.f32 1.0, %v1812
    %v1814 = vrcp.pop %v1810
    %v1815 = vmul.f32 1.0, %v1814
    %v1816 = vrcp.pop %v1811
    %v1817 = vmul.f32 1.0, %v1816
    %v1818 = vtanh.pop %v1799
    %v1819 = vmul.f32 %v1815, %v1580
    %v1820 = vmul.f32 %v1813, %v1818
    %v1821 = vadd.f32 %v1819, %v1820
    %v1822 = vtanh.pop %v1821
    %v1823 = vmul.f32 %v1817, %v1822
    %s1824 = scalar_lea.vmem %s6, 40
    %1825 = vst [vmem:[%s1824] sm:$0xff] %v1823
    %s1826 = scalar_lea.vmem [#allocation2], 192
    %v1827 = vld [vmem:[%s1826] sm:$0xff]
    %v1828 = vld [vmem:[%s1826 + $0x8] sm:$0xff]
    %v1829 = vld [vmem:[%s1826 + $0x10] sm:$0xff]
    %v1830 = vld [vmem:[%s1826 + $0x18] sm:$0xff]
    %v1831 = vld [vmem:[%s2] sm:$0xff]
    %v1832 = vld [vmem:[%s2 + $0x8] sm:$0xff]
    %v1833 = vld [vmem:[%s2 + $0x10] sm:$0xff]
    %v1834 = vld [vmem:[%s2 + $0x18] sm:$0xff]
    %v1835 = vld [vmem:[%s2 + $0x20] sm:$0xff]
    %v1836 = vld [vmem:[%s2 + $0x28] sm:$0xff]
    %v1837 = vld [vmem:[%s2 + $0x30] sm:$0xff]
    %v1838 = vld [vmem:[%s2 + $0x38] sm:$0xff]
    %v1839 = vld [vmem:[%s2 + $0x40] sm:$0xff]
    %v1840 = vld [vmem:[%s2 + $0x48] sm:$0xff]
    %v1841 = vld [vmem:[%s2 + $0x50] sm:$0xff]
    %v1842 = vld [vmem:[%s2 + $0x58] sm:$0xff]
    %v1843 = vld [vmem:[%s2 + $0x60] sm:$0xff]
    %v1844 = vld [vmem:[%s2 + $0x68] sm:$0xff]
    %v1845 = vld [vmem:[%s2 + $0x70] sm:$0xff]
    %v1846 = vld [vmem:[%s2 + $0x78] sm:$0xff]
    %v1847 = vld [vmem:[%s2 + $0x80] sm:$0xff]
    %v1848 = vld [vmem:[%s2 + $0x88] sm:$0xff]
    %v1849 = vld [vmem:[%s2 + $0x90] sm:$0xff]
    %v1850 = vld [vmem:[%s2 + $0x98] sm:$0xff]
    %v1851 = vld [vmem:[%s2 + $0xa0] sm:$0xff]
    %v1852 = vld [vmem:[%s2 + $0xa8] sm:$0xff]
    %v1853 = vld [vmem:[%s2 + $0xb0] sm:$0xff]
    %v1854 = vld [vmem:[%s2 + $0xb8] sm:$0xff]
    %v1855 = vld [vmem:[%s2 + $0xc0] sm:$0xff]
    %v1856 = vld [vmem:[%s2 + $0xc8] sm:$0xff]
    %v1857 = vld [vmem:[%s2 + $0xd0] sm:$0xff]
    %v1858 = vld [vmem:[%s2 + $0xd8] sm:$0xff]
    %v1859 = vld [vmem:[%s2 + $0xe0] sm:$0xff]
    %v1860 = vld [vmem:[%s2 + $0xe8] sm:$0xff]
    %v1861 = vld [vmem:[%s2 + $0xf0] sm:$0xff]
    %v1862 = vld [vmem:[%s2 + $0xf8] sm:$0xff]
    %v1863 = vld [vmem:[%s2 + $0x100] sm:$0xff]
    %v1864 = vld [vmem:[%s2 + $0x108] sm:$0xff]
    %v1865 = vld [vmem:[%s2 + $0x110] sm:$0xff]
    %v1866 = vld [vmem:[%s2 + $0x118] sm:$0xff]
    %v1867 = vld [vmem:[%s2 + $0x120] sm:$0xff]
    %v1868 = vld [vmem:[%s2 + $0x128] sm:$0xff]
    %v1869 = vld [vmem:[%s2 + $0x130] sm:$0xff]
    %v1870 = vld [vmem:[%s2 + $0x138] sm:$0xff]
    %v1871 = vld [vmem:[%s2 + $0x140] sm:$0xff]
    %v1872 = vld [vmem:[%s2 + $0x148] sm:$0xff]
    %v1873 = vld [vmem:[%s2 + $0x150] sm:$0xff]
    %v1874 = vld [vmem:[%s2 + $0x158] sm:$0xff]
    %v1875 = vld [vmem:[%s2 + $0x160] sm:$0xff]
    %v1876 = vld [vmem:[%s2 + $0x168] sm:$0xff]
    %v1877 = vld [vmem:[%s2 + $0x170] sm:$0xff]
    %v1878 = vld [vmem:[%s2 + $0x178] sm:$0xff]
    %v1879 = vld [vmem:[%s2 + $0x180] sm:$0xff]
    %v1880 = vld [vmem:[%s2 + $0x188] sm:$0xff]
    %v1881 = vld [vmem:[%s2 + $0x190] sm:$0xff]
    %v1882 = vld [vmem:[%s2 + $0x198] sm:$0xff]
    %v1883 = vld [vmem:[%s2 + $0x1a0] sm:$0xff]
    %v1884 = vld [vmem:[%s2 + $0x1a8] sm:$0xff]
    %v1885 = vld [vmem:[%s2 + $0x1b0] sm:$0xff]
    %v1886 = vld [vmem:[%s2 + $0x1b8] sm:$0xff]
    %v1887 = vld [vmem:[%s2 + $0x1c0] sm:$0xff]
    %v1888 = vld [vmem:[%s2 + $0x1c8] sm:$0xff]
    %v1889 = vld [vmem:[%s2 + $0x1d0] sm:$0xff]
    %v1890 = vld [vmem:[%s2 + $0x1d8] sm:$0xff]
    %v1891 = vld [vmem:[%s2 + $0x1e0] sm:$0xff]
    %v1892 = vld [vmem:[%s2 + $0x1e8] sm:$0xff]
    %v1893 = vld [vmem:[%s2 + $0x1f0] sm:$0xff]
    %v1894 = vld [vmem:[%s2 + $0x1f8] sm:$0xff]
    %1895 = vmatprep.subr.mxu0 %v1832
    %1896 = vmatpush1.msra.mxu0 %v1831
    %1897 = vmatprep.subr.mxu0 %v1836
    %1898 = vmatpush1.msra.mxu0 %v1835
    %1899 = vmatprep.subr.mxu0 %v1840
    %1900 = vmatpush1.msra.mxu0 %v1839
    %1901 = vmatprep.subr.mxu0 %v1844
    %1902 = vmatpush1.msra.mxu0 %v1843
    %1903 = vmatprep.subr.mxu0 %v1848
    %1904 = vmatpush1.msra.mxu0 %v1847
    %1905 = vmatprep.subr.mxu0 %v1852
    %1906 = vmatpush1.msra.mxu0 %v1851
    %1907 = vmatprep.subr.mxu0 %v1856
    %1908 = vmatpush1.msra.mxu0 %v1855
    %1909 = vmatprep.subr.mxu0 %v1860
    %1910 = vmatpush1.msra.mxu0 %v1859
    %1911 = vmatprep.subr.mxu0 %v1864
    %1912 = vmatpush1.msra.mxu0 %v1863
    %1913 = vmatprep.subr.mxu0 %v1868
    %1914 = vmatpush1.msra.mxu0 %v1867
    %1915 = vmatprep.subr.mxu0 %v1872
    %1916 = vmatpush1.msra.mxu0 %v1871
    %1917 = vmatprep.subr.mxu0 %v1876
    %1918 = vmatpush1.msra.mxu0 %v1875
    %1919 = vmatprep.subr.mxu0 %v1880
    %1920 = vmatpush1.msra.mxu0 %v1879
    %1921 = vmatprep.subr.mxu0 %v1884
    %1922 = vmatpush1.msra.mxu0 %v1883
    %1923 = vmatprep.subr.mxu0 %v1888
    %1924 = vmatpush1.msra.mxu0 %v1887
    %1925 = vmatprep.subr.mxu0 %v1892
    %1926 = vmatpush1.msra.mxu0 %v1891
    %1927 = vmatprep.subr.mxu0 0.0
    %1928 = vmatpush1.msra.mxu0 0.0
    %1929 = vmatprep.subr.mxu0 0.0
    %1930 = vmatpush1.msra.mxu0 0.0
    %1931 = vmatprep.subr.mxu0 0.0
    %1932 = vmatpush1.msra.mxu0 0.0
    %1933 = vmatprep.subr.mxu0 0.0
    %1934 = vmatpush1.msra.mxu0 0.0
    %1935 = vmatprep.subr.mxu0 0.0
    %1936 = vmatpush1.msra.mxu0 0.0
    %1937 = vmatprep.subr.mxu0 0.0
    %1938 = vmatpush1.msra.mxu0 0.0
    %1939 = vmatprep.subr.mxu0 0.0
    %1940 = vmatpush1.msra.mxu0 0.0
    %1941 = vmatprep.subr.mxu0 0.0
    %1942 = vmatpush1.msra.mxu0 0.0
    %1943 = vmatprep.subr.mxu0 0.0
    %1944 = vmatpush1.msra.mxu0 0.0
    %1945 = vmatprep.subr.mxu0 0.0
    %1946 = vmatpush1.msra.mxu0 0.0
    %1947 = vmatprep.subr.mxu0 0.0
    %1948 = vmatpush1.msra.mxu0 0.0
    %1949 = vmatprep.subr.mxu0 0.0
    %1950 = vmatpush1.msra.mxu0 0.0
    %1951 = vmatprep.subr.mxu0 0.0
    %1952 = vmatpush1.msra.mxu0 0.0
    %1953 = vmatprep.subr.mxu0 0.0
    %1954 = vmatpush1.msra.mxu0 0.0
    %1955 = vmatprep.subr.mxu0 0.0
    %1956 = vmatpush1.msra.mxu0 0.0
    %1957 = vmatprep.subr.mxu0 0.0
    %1958 = vmatpush1.msra.mxu0 0.0
    %1959 = vmatprep.mubr.f32.mxu0 0.0
    %1960 = vmatmul.mubr.f32.gmra.mrb[0].mxu0 %v1823
    %v1961 = vpop.f32.mrb[0].mxu0
    %v1962 = vadd.f32 0.0, %v1961
    %v1963 = vpop.f32.mrb[0].mxu0
    %v1964 = vadd.f32 0.0, %v1963
    %1965 = vdwg.mxu0
    %1966 = vmatprep.subr.mxu0 %v1834
    %1967 = vmatpush1.msra.mxu0 %v1833
    %1968 = vmatprep.subr.mxu0 %v1838
    %1969 = vmatpush1.msra.mxu0 %v1837
    %1970 = vmatprep.subr.mxu0 %v1842
    %1971 = vmatpush1.msra.mxu0 %v1841
    %1972 = vmatprep.subr.mxu0 %v1846
    %1973 = vmatpush1.msra.mxu0 %v1845
    %1974 = vmatprep.subr.mxu0 %v1850
    %1975 = vmatpush1.msra.mxu0 %v1849
    %1976 = vmatprep.subr.mxu0 %v1854
    %1977 = vmatpush1.msra.mxu0 %v1853
    %1978 = vmatprep.subr.mxu0 %v1858
    %1979 = vmatpush1.msra.mxu0 %v1857
    %1980 = vmatprep.subr.mxu0 %v1862
    %1981 = vmatpush1.msra.mxu0 %v1861
    %1982 = vmatprep.subr.mxu0 %v1866
    %1983 = vmatpush1.msra.mxu0 %v1865
    %1984 = vmatprep.subr.mxu0 %v1870
    %1985 = vmatpush1.msra.mxu0 %v1869
    %1986 = vmatprep.subr.mxu0 %v1874
    %1987 = vmatpush1.msra.mxu0 %v1873
    %1988 = vmatprep.subr.mxu0 %v1878
    %1989 = vmatpush1.msra.mxu0 %v1877
    %1990 = vmatprep.subr.mxu0 %v1882
    %1991 = vmatpush1.msra.mxu0 %v1881
    %1992 = vmatprep.subr.mxu0 %v1886
    %1993 = vmatpush1.msra.mxu0 %v1885
    %1994 = vmatprep.subr.mxu0 %v1890
    %1995 = vmatpush1.msra.mxu0 %v1889
    %1996 = vmatprep.subr.mxu0 %v1894
    %1997 = vmatpush1.msra.mxu0 %v1893
    %1998 = vmatprep.subr.mxu0 0.0
    %1999 = vmatpush1.msra.mxu0 0.0
    %2000 = vmatprep.subr.mxu0 0.0
    %2001 = vmatpush1.msra.mxu0 0.0
    %2002 = vmatprep.subr.mxu0 0.0
    %2003 = vmatpush1.msra.mxu0 0.0
    %2004 = vmatprep.subr.mxu0 0.0
    %2005 = vmatpush1.msra.mxu0 0.0
    %2006 = vmatprep.subr.mxu0 0.0
    %2007 = vmatpush1.msra.mxu0 0.0
    %2008 = vmatprep.subr.mxu0 0.0
    %2009 = vmatpush1.msra.mxu0 0.0
    %2010 = vmatprep.subr.mxu0 0.0
    %2011 = vmatpush1.msra.mxu0 0.0
    %2012 = vmatprep.subr.mxu0 0.0
    %2013 = vmatpush1.msra.mxu0 0.0
    %2014 = vmatprep.subr.mxu0 0.0
    %2015 = vmatpush1.msra.mxu0 0.0
    %2016 = vmatprep.subr.mxu0 0.0
    %2017 = vmatpush1.msra.mxu0 0.0
    %2018 = vmatprep.subr.mxu0 0.0
    %2019 = vmatpush1.msra.mxu0 0.0
    %2020 = vmatprep.subr.mxu0 0.0
    %2021 = vmatpush1.msra.mxu0 0.0
    %2022 = vmatprep.subr.mxu0 0.0
    %2023 = vmatpush1.msra.mxu0 0.0
    %2024 = vmatprep.subr.mxu0 0.0
    %2025 = vmatpush1.msra.mxu0 0.0
    %2026 = vmatprep.subr.mxu0 0.0
    %2027 = vmatpush1.msra.mxu0 0.0
    %2028 = vmatprep.subr.mxu0 0.0
    %2029 = vmatpush1.msra.mxu0 0.0
    %2030 = vmatprep.mubr.f32.mxu0 0.0
    %2031 = vmatmul.mubr.f32.gmra.mrb[0].mxu0 %v1823
    %v2032 = vpop.f32.mrb[0].mxu0
    %v2033 = vadd.f32 0.0, %v2032
    %v2034 = vpop.f32.mrb[0].mxu0
    %v2035 = vadd.f32 0.0, %v2034
    %2036 = vdwg.mxu0
    %v2037 = vadd.f32 %v1827, %v1962
    %v2038 = vadd.f32 %v1828, %v1964
    %v2039 = vadd.f32 %v1829, %v2033
    %v2040 = vadd.f32 %v1830, %v2035
    %v2041 = vxor.u32 %v2037, 2147483648
    %v2042 = vxor.u32 %v2038, 2147483648
    %v2043 = vxor.u32 %v2039, 2147483648
    %v2044 = vmul.f32 %v2041, 1.442695
    %v2045 = vpow.pop %v2044
    %v2046 = vmul.f32 %v2042, 1.442695
    %v2047 = vpow.pop %v2046
    %v2048 = vmul.f32 %v2043, 1.442695
    %v2049 = vpow.pop %v2048
    %v2050 = vadd.f32 %v2045, 1.0
    %v2051 = vadd.f32 %v2047, 1.0
    %v2052 = vadd.f32 %v2049, 1.0
    %v2053 = vrcp.pop %v2050
    %v2054 = vmul.f32 1.0, %v2053
    %v2055 = vrcp.pop %v2051
    %v2056 = vmul.f32 1.0, %v2055
    %v2057 = vrcp.pop %v2052
    %v2058 = vmul.f32 1.0, %v2057
    %v2059 = vtanh.pop %v2040
    %v2060 = vmul.f32 %v2056, %v1821
    %v2061 = vmul.f32 %v2054, %v2059
    %v2062 = vadd.f32 %v2060, %v2061
    %v2063 = vtanh.pop %v2062
    %v2064 = vmul.f32 %v2058, %v2063
    %s2065 = scalar_lea.vmem %s6, 48
    %2066 = vst [vmem:[%s2065] sm:$0xff] %v2064
    %s2067 = scalar_lea.vmem [#allocation2], 224
    %v2068 = vld [vmem:[%s2067] sm:$0xff]
    %v2069 = vld [vmem:[%s2067 + $0x8] sm:$0xff]
    %v2070 = vld [vmem:[%s2067 + $0x10] sm:$0xff]
    %v2071 = vld [vmem:[%s2067 + $0x18] sm:$0xff]
    %v2072 = vld [vmem:[%s2] sm:$0xff]
    %v2073 = vld [vmem:[%s2 + $0x8] sm:$0xff]
    %v2074 = vld [vmem:[%s2 + $0x10] sm:$0xff]
    %v2075 = vld [vmem:[%s2 + $0x18] sm:$0xff]
    %v2076 = vld [vmem:[%s2 + $0x20] sm:$0xff]
    %v2077 = vld [vmem:[%s2 + $0x28] sm:$0xff]
    %v2078 = vld [vmem:[%s2 + $0x30] sm:$0xff]
    %v2079 = vld [vmem:[%s2 + $0x38] sm:$0xff]
    %v2080 = vld [vmem:[%s2 + $0x40] sm:$0xff]
    %v2081 = vld [vmem:[%s2 + $0x48] sm:$0xff]
    %v2082 = vld [vmem:[%s2 + $0x50] sm:$0xff]
    %v2083 = vld [vmem:[%s2 + $0x58] sm:$0xff]
    %v2084 = vld [vmem:[%s2 + $0x60] sm:$0xff]
    %v2085 = vld [vmem:[%s2 + $0x68] sm:$0xff]
    %v2086 = vld [vmem:[%s2 + $0x70] sm:$0xff]
    %v2087 = vld [vmem:[%s2 + $0x78] sm:$0xff]
    %v2088 = vld [vmem:[%s2 + $0x80] sm:$0xff]
    %v2089 = vld [vmem:[%s2 + $0x88] sm:$0xff]
    %v2090 = vld [vmem:[%s2 + $0x90] sm:$0xff]
    %v2091 = vld [vmem:[%s2 + $0x98] sm:$0xff]
    %v2092 = vld [vmem:[%s2 + $0xa0] sm:$0xff]
    %v2093 = vld [vmem:[%s2 + $0xa8] sm:$0xff]
    %v2094 = vld [vmem:[%s2 + $0xb0] sm:$0xff]
    %v2095 = vld [vmem:[%s2 + $0xb8] sm:$0xff]
    %v2096 = vld [vmem:[%s2 + $0xc0] sm:$0xff]
    %v2097 = vld [vmem:[%s2 + $0xc8] sm:$0xff]
    %v2098 = vld [vmem:[%s2 + $0xd0] sm:$0xff]
    %v2099 = vld [vmem:[%s2 + $0xd8] sm:$0xff]
    %v2100 = vld [vmem:[%s2 + $0xe0] sm:$0xff]
    %v2101 = vld [vmem:[%s2 + $0xe8] sm:$0xff]
    %v2102 = vld [vmem:[%s2 + $0xf0] sm:$0xff]
    %v2103 = vld [vmem:[%s2 + $0xf8] sm:$0xff]
    %v2104 = vld [vmem:[%s2 + $0x100] sm:$0xff]
    %v2105 = vld [vmem:[%s2 + $0x108] sm:$0xff]
    %v2106 = vld [vmem:[%s2 + $0x110] sm:$0xff]
    %v2107 = vld [vmem:[%s2 + $0x118] sm:$0xff]
    %v2108 = vld [vmem:[%s2 + $0x120] sm:$0xff]
    %v2109 = vld [vmem:[%s2 + $0x128] sm:$0xff]
    %v2110 = vld [vmem:[%s2 + $0x130] sm:$0xff]
    %v2111 = vld [vmem:[%s2 + $0x138] sm:$0xff]
    %v2112 = vld [vmem:[%s2 + $0x140] sm:$0xff]
    %v2113 = vld [vmem:[%s2 + $0x148] sm:$0xff]
    %v2114 = vld [vmem:[%s2 + $0x150] sm:$0xff]
    %v2115 = vld [vmem:[%s2 + $0x158] sm:$0xff]
    %v2116 = vld [vmem:[%s2 + $0x160] sm:$0xff]
    %v2117 = vld [vmem:[%s2 + $0x168] sm:$0xff]
    %v2118 = vld [vmem:[%s2 + $0x170] sm:$0xff]
    %v2119 = vld [vmem:[%s2 + $0x178] sm:$0xff]
    %v2120 = vld [vmem:[%s2 + $0x180] sm:$0xff]
    %v2121 = vld [vmem:[%s2 + $0x188] sm:$0xff]
    %v2122 = vld [vmem:[%s2 + $0x190] sm:$0xff]
    %v2123 = vld [vmem:[%s2 + $0x198] sm:$0xff]
    %v2124 = vld [vmem:[%s2 + $0x1a0] sm:$0xff]
    %v2125 = vld [vmem:[%s2 + $0x1a8] sm:$0xff]
    %v2126 = vld [vmem:[%s2 + $0x1b0] sm:$0xff]
    %v2127 = vld [vmem:[%s2 + $0x1b8] sm:$0xff]
    %v2128 = vld [vmem:[%s2 + $0x1c0] sm:$0xff]
    %v2129 = vld [vmem:[%s2 + $0x1c8] sm:$0xff]
    %v2130 = vld [vmem:[%s2 + $0x1d0] sm:$0xff]
    %v2131 = vld [vmem:[%s2 + $0x1d8] sm:$0xff]
    %v2132 = vld [vmem:[%s2 + $0x1e0] sm:$0xff]
    %v2133 = vld [vmem:[%s2 + $0x1e8] sm:$0xff]
    %v2134 = vld [vmem:[%s2 + $0x1f0] sm:$0xff]
    %v2135 = vld [vmem:[%s2 + $0x1f8] sm:$0xff]
    %2136 = vmatprep.subr.mxu0 %v2073
    %2137 = vmatpush1.msra.mxu0 %v2072
    %2138 = vmatprep.subr.mxu0 %v2077
    %2139 = vmatpush1.msra.mxu0 %v2076
    %2140 = vmatprep.subr.mxu0 %v2081
    %2141 = vmatpush1.msra.mxu0 %v2080
    %2142 = vmatprep.subr.mxu0 %v2085
    %2143 = vmatpush1.msra.mxu0 %v2084
    %2144 = vmatprep.subr.mxu0 %v2089
    %2145 = vmatpush1.msra.mxu0 %v2088
    %2146 = vmatprep.subr.mxu0 %v2093
    %2147 = vmatpush1.msra.mxu0 %v2092
    %2148 = vmatprep.subr.mxu0 %v2097
    %2149 = vmatpush1.msra.mxu0 %v2096
    %2150 = vmatprep.subr.mxu0 %v2101
    %2151 = vmatpush1.msra.mxu0 %v2100
    %2152 = vmatprep.subr.mxu0 %v2105
    %2153 = vmatpush1.msra.mxu0 %v2104
    %2154 = vmatprep.subr.mxu0 %v2109
    %2155 = vmatpush1.msra.mxu0 %v2108
    %2156 = vmatprep.subr.mxu0 %v2113
    %2157 = vmatpush1.msra.mxu0 %v2112
    %2158 = vmatprep.subr.mxu0 %v2117
    %2159 = vmatpush1.msra.mxu0 %v2116
    %2160 = vmatprep.subr.mxu0 %v2121
    %2161 = vmatpush1.msra.mxu0 %v2120
    %2162 = vmatprep.subr.mxu0 %v2125
    %2163 = vmatpush1.msra.mxu0 %v2124
    %2164 = vmatprep.subr.mxu0 %v2129
    %2165 = vmatpush1.msra.mxu0 %v2128
    %2166 = vmatprep.subr.mxu0 %v2133
    %2167 = vmatpush1.msra.mxu0 %v2132
    %2168 = vmatprep.subr.mxu0 0.0
    %2169 = vmatpush1.msra.mxu0 0.0
    %2170 = vmatprep.subr.mxu0 0.0
    %2171 = vmatpush1.msra.mxu0 0.0
    %2172 = vmatprep.subr.mxu0 0.0
    %2173 = vmatpush1.msra.mxu0 0.0
    %2174 = vmatprep.subr.mxu0 0.0
    %2175 = vmatpush1.msra.mxu0 0.0
    %2176 = vmatprep.subr.mxu0 0.0
    %2177 = vmatpush1.msra.mxu0 0.0
    %2178 = vmatprep.subr.mxu0 0.0
    %2179 = vmatpush1.msra.mxu0 0.0
    %2180 = vmatprep.subr.mxu0 0.0
    %2181 = vmatpush1.msra.mxu0 0.0
    %2182 = vmatprep.subr.mxu0 0.0
    %2183 = vmatpush1.msra.mxu0 0.0
    %2184 = vmatprep.subr.mxu0 0.0
    %2185 = vmatpush1.msra.mxu0 0.0
    %2186 = vmatprep.subr.mxu0 0.0
    %2187 = vmatpush1.msra.mxu0 0.0
    %2188 = vmatprep.subr.mxu0 0.0
    %2189 = vmatpush1.msra.mxu0 0.0
    %2190 = vmatprep.subr.mxu0 0.0
    %2191 = vmatpush1.msra.mxu0 0.0
    %2192 = vmatprep.subr.mxu0 0.0
    %2193 = vmatpush1.msra.mxu0 0.0
    %2194 = vmatprep.subr.mxu0 0.0
    %2195 = vmatpush1.msra.mxu0 0.0
    %2196 = vmatprep.subr.mxu0 0.0
    %2197 = vmatpush1.msra.mxu0 0.0
    %2198 = vmatprep.subr.mxu0 0.0
    %2199 = vmatpush1.msra.mxu0 0.0
    %2200 = vmatprep.mubr.f32.mxu0 0.0
    %2201 = vmatmul.mubr.f32.gmra.mrb[0].mxu0 %v2064
    %v2202 = vpop.f32.mrb[0].mxu0
    %v2203 = vadd.f32 0.0, %v2202
    %v2204 = vpop.f32.mrb[0].mxu0
    %v2205 = vadd.f32 0.0, %v2204
    %2206 = vdwg.mxu0
    %2207 = vmatprep.subr.mxu0 %v2075
    %2208 = vmatpush1.msra.mxu0 %v2074
    %2209 = vmatprep.subr.mxu0 %v2079
    %2210 = vmatpush1.msra.mxu0 %v2078
    %2211 = vmatprep.subr.mxu0 %v2083
    %2212 = vmatpush1.msra.mxu0 %v2082
    %2213 = vmatprep.subr.mxu0 %v2087
    %2214 = vmatpush1.msra.mxu0 %v2086
    %2215 = vmatprep.subr.mxu0 %v2091
    %2216 = vmatpush1.msra.mxu0 %v2090
    %2217 = vmatprep.subr.mxu0 %v2095
    %2218 = vmatpush1.msra.mxu0 %v2094
    %2219 = vmatprep.subr.mxu0 %v2099
    %2220 = vmatpush1.msra.mxu0 %v2098
    %2221 = vmatprep.subr.mxu0 %v2103
    %2222 = vmatpush1.msra.mxu0 %v2102
    %2223 = vmatprep.subr.mxu0 %v2107
    %2224 = vmatpush1.msra.mxu0 %v2106
    %2225 = vmatprep.subr.mxu0 %v2111
    %2226 = vmatpush1.msra.mxu0 %v2110
    %2227 = vmatprep.subr.mxu0 %v2115
    %2228 = vmatpush1.msra.mxu0 %v2114
    %2229 = vmatprep.subr.mxu0 %v2119
    %2230 = vmatpush1.msra.mxu0 %v2118
    %2231 = vmatprep.subr.mxu0 %v2123
    %2232 = vmatpush1.msra.mxu0 %v2122
    %2233 = vmatprep.subr.mxu0 %v2127
    %2234 = vmatpush1.msra.mxu0 %v2126
    %2235 = vmatprep.subr.mxu0 %v2131
    %2236 = vmatpush1.msra.mxu0 %v2130
    %2237 = vmatprep.subr.mxu0 %v2135
    %2238 = vmatpush1.msra.mxu0 %v2134
    %2239 = vmatprep.subr.mxu0 0.0
    %2240 = vmatpush1.msra.mxu0 0.0
    %2241 = vmatprep.subr.mxu0 0.0
    %2242 = vmatpush1.msra.mxu0 0.0
    %2243 = vmatprep.subr.mxu0 0.0
    %2244 = vmatpush1.msra.mxu0 0.0
    %2245 = vmatprep.subr.mxu0 0.0
    %2246 = vmatpush1.msra.mxu0 0.0
    %2247 = vmatprep.subr.mxu0 0.0
    %2248 = vmatpush1.msra.mxu0 0.0
    %2249 = vmatprep.subr.mxu0 0.0
    %2250 = vmatpush1.msra.mxu0 0.0
    %2251 = vmatprep.subr.mxu0 0.0
    %2252 = vmatpush1.msra.mxu0 0.0
    %2253 = vmatprep.subr.mxu0 0.0
    %2254 = vmatpush1.msra.mxu0 0.0
    %2255 = vmatprep.subr.mxu0 0.0
    %2256 = vmatpush1.msra.mxu0 0.0
    %2257 = vmatprep.subr.mxu0 0.0
    %2258 = vmatpush1.msra.mxu0 0.0
    %2259 = vmatprep.subr.mxu0 0.0
    %2260 = vmatpush1.msra.mxu0 0.0
    %2261 = vmatprep.subr.mxu0 0.0
    %2262 = vmatpush1.msra.mxu0 0.0
    %2263 = vmatprep.subr.mxu0 0.0
    %2264 = vmatpush1.msra.mxu0 0.0
    %2265 = vmatprep.subr.mxu0 0.0
    %2266 = vmatpush1.msra.mxu0 0.0
    %2267 = vmatprep.subr.mxu0 0.0
    %2268 = vmatpush1.msra.mxu0 0.0
    %2269 = vmatprep.subr.mxu0 0.0
    %2270 = vmatpush1.msra.mxu0 0.0
    %2271 = vmatprep.mubr.f32.mxu0 0.0
    %2272 = vmatmul.mubr.f32.gmra.mrb[0].mxu0 %v2064
    %v2273 = vpop.f32.mrb[0].mxu0
    %v2274 = vadd.f32 0.0, %v2273
    %v2275 = vpop.f32.mrb[0].mxu0
    %v2276 = vadd.f32 0.0, %v2275
    %2277 = vdwg.mxu0
    %v2278 = vadd.f32 %v2068, %v2203
    %v2279 = vadd.f32 %v2069, %v2205
    %v2280 = vadd.f32 %v2070, %v2274
    %v2281 = vadd.f32 %v2071, %v2276
    %v2282 = vxor.u32 %v2278, 2147483648
    %v2283 = vxor.u32 %v2279, 2147483648
    %v2284 = vxor.u32 %v2280, 2147483648
    %v2285 = vmul.f32 %v2282, 1.442695
    %v2286 = vpow.pop %v2285
    %v2287 = vmul.f32 %v2283, 1.442695
    %v2288 = vpow.pop %v2287
    %v2289 = vmul.f32 %v2284, 1.442695
    %v2290 = vpow.pop %v2289
    %v2291 = vadd.f32 %v2286, 1.0
    %v2292 = vadd.f32 %v2288, 1.0
    %v2293 = vadd.f32 %v2290, 1.0
    %v2294 = vrcp.pop %v2291
    %v2295 = vmul.f32 1.0, %v2294
    %v2296 = vrcp.pop %v2292
    %v2297 = vmul.f32 1.0, %v2296
    %v2298 = vrcp.pop %v2293
    %v2299 = vmul.f32 1.0, %v2298
    %v2300 = vtanh.pop %v2281
    %v2301 = vmul.f32 %v2297, %v2062
    %v2302 = vmul.f32 %v2295, %v2300
    %v2303 = vadd.f32 %v2301, %v2302
    %v2304 = vtanh.pop %v2303
    %v2305 = vmul.f32 %v2299, %v2304
    %s2306 = scalar_lea.vmem %s6, 56
    %2307 = vst [vmem:[%s2306] sm:$0xff] %v2305
    %2308 = vst [vmem:[#allocation3] sm:$0xff] %v2305
    %2309 = vst [vmem:[#allocation5] sm:$0xff] %v2303
    // Predicated region
    $region26: #{lstm_bart_forward.1} parent=1 // pred_check
      _
    $region27: #{lstm_bart_forward.1} parent=1 // pred_check_branch
      %2311 = sbr.rel (0) target = $region29
    $region28: #{lstm_bart_forward.1} parent=1 // pred_region
      _
    $region29: #{lstm_bart_forward.1} parent=1 // pred_fallthru
      _
    // Predicated region
    $region30: #{lstm_bart_forward.1} parent=1 // pred_check
      _
    $region31: #{lstm_bart_forward.1} parent=1 // pred_check_branch
      %2313 = sbr.rel (0) target = $region33
    $region32: #{lstm_bart_forward.1} parent=1 // pred_region
      %s2315 = ssub.s32 128, 128
      %2316 = vsyncadd [#allocation4], %s2315
      %s2318 = sshll.u32 [#allocation3], 4
      %s2319 = int_to_ptr.vmem [resolvable:$true] %s2318
      %2321 = dma.vmem_to_hbm [thread:$0]  %s2319, 128, %s7, [#allocation4]
    $region33: #{lstm_bart_forward.1} parent=1 // pred_fallthru
      _
    // Predicated region
    $region34: #{lstm_bart_forward.1} parent=1 // pred_check
      _
    $region35: #{lstm_bart_forward.1} parent=1 // pred_check_branch
      %2323 = sbr.rel (0) target = $region37
    $region36: #{lstm_bart_forward.1} parent=1 // pred_region
      %s2325 = ssub.s32 128, 128
      %2326 = vsyncadd [#allocation6], %s2325
      %s2328 = sshll.u32 [#allocation5], 4
      %s2329 = int_to_ptr.vmem [resolvable:$true] %s2328
      %2331 = dma.vmem_to_hbm [thread:$0]  %s2329, 128, %s8, [#allocation6]
    $region37: #{lstm_bart_forward.1} parent=1 // pred_fallthru
      _
    // Predicated region
    $region38: #{lstm_bart_forward.1} parent=1 // pred_check
      _
    $region39: #{lstm_bart_forward.1} parent=1 // pred_check_branch
      %2333 = sbr.rel (0) target = $region41
    $region40: #{lstm_bart_forward.1} parent=1 // pred_region
      _
    $region41: #{lstm_bart_forward.1} parent=1 // pred_fallthru
      _
    // Predicated region
    $region42: #{lstm_bart_forward.1} parent=1 // pred_check
      _
    $region43: #{lstm_bart_forward.1} parent=1 // pred_check_branch
      %2335 = sbr.rel (0) target = $region45
    $region44: #{lstm_bart_forward.1} parent=1 // pred_region
      %2336 = dma.done [#allocation4], 128
    $region45: #{lstm_bart_forward.1} parent=1 // pred_fallthru
      _
    // Predicated region
    $region46: #{lstm_bart_forward.1} parent=1 // pred_check
      _
    $region47: #{lstm_bart_forward.1} parent=1 // pred_check_branch
      %2338 = sbr.rel (0) target = $region49
    $region48: #{lstm_bart_forward.1} parent=1 // pred_region
      %2339 = dma.done [#allocation6], 128
    $region49: #{lstm_bart_forward.1} parent=1 // pred_fallthru
      _
    %2340 = vsyncpa [#allocation4], 1
    %2341 = vsyncpa [#allocation6], 1

</llo_original>
